<compile_context>
chip_gen: v5e
topology: v5e:2x2
jax: 0.10.0
libtpu: 0.0.40
codegen_flags: <defaults>
</compile_context>

<pallas_src>
import jax
import jax.numpy as jnp
from jax.experimental import pallas as pl
from jax.experimental.pallas import tpu as pltpu

MASK_VALUE = -1e9
LANE = 128       # TPU lane width: keep the last (store) dim lane-dense.
SUBLANE = 8


def _round_up(x, m):
    return ((x + m - 1) // m) * m


def luong_attention_kernel(hidden_ref, w_ref, enc_ref, bias_ref, out_ref):
    """One batch tile: projection matmul + batched score + bias + softmax.

    hidden_ref: [TB, E]        model dtype
    w_ref:      [E, E]         model dtype, already transposed to [in, out]
    enc_ref:    [TB, Sp, E]    model dtype (Sp = seq len padded to 128)
    bias_ref:   [TB, Sp] f32   0 = keep, MASK_VALUE = masked, -inf = pad column
    out_ref:    [TB, Sp] f32
    """
    # attended_hidden = hidden @ W.T — model dtype in, f32 accumulate on the MXU.
    attended = jnp.dot(hidden_ref[...], w_ref[...],
                       preferred_element_type=jnp.float32,
                       precision=jax.lax.Precision.HIGHEST)            # [TB, E] f32

    # score[b, s] = <enc[b, s, :], attended[b, :]>
    # Batched MXU contraction in the model dtype (no f32 copy of the enc tile).
    score = jax.lax.dot_general(
        enc_ref[...], attended.astype(enc_ref.dtype)[..., None],
        dimension_numbers=(((2,), (1,)), ((0,), (0,))),
        preferred_element_type=jnp.float32,
        precision=jax.lax.Precision.HIGHEST)[..., 0]                   # [TB, Sp]

    # mask + seq-padding handled by one precomputed additive bias.
    score = score + bias_ref[...]

    # softmax over the (padded) seq dimension; exact divide keeps row sums == 1.
    m = jnp.max(score, axis=-1, keepdims=True)
    e = jnp.exp(score - m)
    denom = jnp.sum(e, axis=-1, keepdims=True)
    out_ref[...] = e / denom


def luong_attention(hidden, encoder_outputs, mask, weight, *,
                    vmem_limit_bytes=None, enc_buffers=2):
    """hidden [B,E], encoder_outputs [B,S,E], mask [S,B] bool (True = masked),
    weight [E,E] = nn.Linear weight (out, in). Returns softmax weights [B,S] f32."""
    B, S, E = encoder_outputs.shape
    itemsize = encoder_outputs.dtype.itemsize

    # --- generation-aware scoped-VMEM budget ---------------------------------
    # ~96 MiB on 128 MiB parts (v5e/v6e), ~48 MiB on 64 MiB parts (v7x).
    if vmem_limit_bytes is None:
        try:
            phys = int(pltpu.get_tpu_info().vmem_capacity_bytes)
        except Exception:
            phys = 64 << 20                      # conservative fallback (v7x)
        vmem_limit_bytes = min((phys * 3) // 4, 100 << 20)
    vmem_limit_bytes = int(vmem_limit_bytes)

    # Lane-dense output: pad seq len up to a multiple of 128.
    S_pad = _round_up(max(S, LANE), LANE)
    E_lane = _round_up(E, LANE)                  # enc tiles are lane-padded in VMEM

    # --- batch tile sized against the VMEM budget (temp-accurate) ------------
    per_row = (enc_buffers * S_pad * E_lane * itemsize   # enc DMA buffers (dominant)
               + 2 * S_pad * 4                           # bias DMA buffers (f32)
               + 2 * S_pad * 4                           # out DMA buffers (f32)
               + 4 * S_pad * 4                           # in-kernel f32 temps (score/exp/...)
               + 2 * E_lane * (itemsize + 4))            # hidden buffers + attended temp
    fixed = 2 * E_lane * E_lane * itemsize + (1 << 20)   # resident weight + headroom
    tb_cap = max(1, (vmem_limit_bytes - fixed) // per_row)

    if B <= tb_cap:
        if B >= 2 * SUBLANE:
            # Whole batch fits one tile, but emit >= 2 tiles so the "parallel"
            # grid axis can use both TensorCores on v7x (sublane-aligned).
            TB = _round_up((B + 1) // 2, SUBLANE)
            B_pad = _round_up(B, TB)
        else:
            TB, B_pad = B, B                     # single tile, no batch padding
    else:
        if tb_cap >= SUBLANE:
            TB = (tb_cap // SUBLANE) * SUBLANE   # keep (8,128) tiling legal
        else:
            # TODO(synk): add a seq-chunk grid axis when even an 8-row batch
            # tile overflows the VMEM budget (huge S * E).
            TB = SUBLANE
        B_pad = _round_up(B, TB)

    # --- wrapper-side layout glue --------------------------------------------
    # Pre-transpose Linear weight to [in, out]; keep model dtype across the DMA.
    w_t = weight.T
    # Additive softmax bias: 0 keep, MASK_VALUE masked, -inf padded seq columns,
    # MASK_VALUE for padded batch rows (finite -> no NaNs; rows are discarded).
    mask_bs = mask.T.astype(bool)                                        # [B, S]
    bias = jnp.where(mask_bs, jnp.float32(MASK_VALUE), jnp.float32(0.0))
    bias = jnp.pad(bias, ((0, 0), (0, S_pad - S)), constant_values=-jnp.inf)
    bias = jnp.pad(bias, ((0, B_pad - B), (0, 0)), constant_values=MASK_VALUE)

    enc = encoder_outputs
    hid = hidden
    if S_pad != S:
        enc = jnp.pad(enc, ((0, 0), (0, S_pad - S), (0, 0)))
    if B_pad != B:
        enc = jnp.pad(enc, ((0, B_pad - B), (0, 0), (0, 0)))
        hid = jnp.pad(hid, ((0, B_pad - B), (0, 0)))

    grid = (B_pad // TB,)

    out = pl.pallas_call(
        luong_attention_kernel,
        out_shape=jax.ShapeDtypeStruct((B_pad, S_pad), jnp.float32),
        grid=grid,
        in_specs=[
            pl.BlockSpec((TB, E), lambda i: (i, 0)),                    # hidden
            pl.BlockSpec((E, E), lambda i: (0, 0)),                     # weight (resident)
            pl.BlockSpec((TB, S_pad, E), lambda i: (i, 0, 0),           # encoder outputs
                         pipeline_mode=pl.Buffered(enc_buffers)),
            pl.BlockSpec((TB, S_pad), lambda i: (i, 0)),                # additive bias
        ],
        out_specs=pl.BlockSpec((TB, S_pad), lambda i: (i, 0)),
        compiler_params=pltpu.CompilerParams(
            dimension_semantics=("parallel",),     # shard batch tiles across TCs (v7x)
            vmem_limit_bytes=vmem_limit_bytes,
        ),
    )(hid, w_t, enc, bias)

    return out[:B, :S]


def luong_attention_ref(hidden, encoder_outputs, mask, weight):
    """Pure-JAX reference mirroring the PyTorch forward."""
    mask_bs = mask.T
    attended = hidden @ weight.T                                   # [B, E]
    score = jnp.einsum("bse,be->bs", encoder_outputs, attended,
                       precision=jax.lax.Precision.HIGHEST)        # [B, S]
    score = jnp.where(~mask_bs, score, jnp.full_like(score, MASK_VALUE))
    return jax.nn.softmax(score, axis=1)


if __name__ == "__main__":
    B, S, E = 2, 8, 32  # batch, seq len, units

    key = jax.random.PRNGKey(0)
    k_h, k_enc, k_mask, k_w = jax.random.split(key, 4)

    hidden = jax.random.normal(k_h, (B, E), dtype=jnp.float32)
    encoder_outputs = jax.random.normal(k_enc, (B, S, E), dtype=jnp.float32)
    # mask passed as [S, B] (forward transposes it); True = masked position.
    mask = jax.random.bernoulli(k_mask, p=0.3, shape=(S, B))
    # Deterministic nn.Linear(units, units, bias=False) weight, shape [out, in].
    bound = 1.0 / (E ** 0.5)
    weight = jax.random.uniform(k_w, (E, E), dtype=jnp.float32,
                                minval=-bound, maxval=bound)

    out = luong_attention(hidden, encoder_outputs, mask, weight)
    out = jax.block_until_ready(out)

    ref = luong_attention_ref(hidden, encoder_outputs, mask, weight)
    assert out.shape == (B, S)
    assert jnp.allclose(out, ref, atol=1e-5, rtol=1e-5), "mismatch vs reference"
    assert jnp.allclose(jnp.sum(out, axis=1), jnp.ones((B,)), atol=1e-5)

    print("KERNEL_OK")
</pallas_src>

<mosaic_0001>
module attributes {stable_mosaic.version = 11 : i64} {
  func.func @luong_attention_kernel(%arg0: i32, %arg1: memref<2x32xf32, #tpu.memory_space<vmem>>, %arg2: memref<32x32xf32, #tpu.memory_space<vmem>>, %arg3: memref<2x128x32xf32, #tpu.memory_space<vmem>>, %arg4: memref<2x128xf32, #tpu.memory_space<vmem>>, %arg5: memref<2x128xf32, #tpu.memory_space<vmem>>) attributes {dimension_semantics = [#tpu.dimension_semantics<parallel>], iteration_bounds = array<i64: 1>, scalar_prefetch = 0 : i64, scratch_operands = 0 : i64, tpu.core_type = #tpu.core_type<tc>, window_params = [{transform_indices = @transform_0, window_bounds = array<i64: 2, 32>}, {pipeline_mode = #tpu.pipeline_mode<synchronous>, transform_indices = @transform_1, window_bounds = array<i64: 32, 32>}, {pipeline_mode = #tpu.pipeline_mode<double_buffered>, transform_indices = @transform_2, window_bounds = array<i64: 2, 128, 32>}, {transform_indices = @transform_3, window_bounds = array<i64: 2, 128>}, {transform_indices = @transform_4, window_bounds = array<i64: 2, 128>}]} {
    %c0 = arith.constant 0 : index
    %c0_0 = arith.constant 0 : index
    %0 = vector.load %arg1[%c0, %c0_0] : memref<2x32xf32, #tpu.memory_space<vmem>>, vector<2x32xf32>
    %c0_1 = arith.constant 0 : index
    %c0_2 = arith.constant 0 : index
    %1 = vector.load %arg2[%c0_1, %c0_2] : memref<32x32xf32, #tpu.memory_space<vmem>>, vector<32x32xf32>
    %cst = arith.constant dense<0.000000e+00> : vector<2x32xf32>
    %2 = tpu.matmul %0, %1, %cst {dimension_numbers = #tpu.dot_dimension_numbers<[1], [0], [0], [1], [0, 0, 1, 1], [], []>, precision = #tpu.contract_precision<fp32>} : vector<2x32xf32>, vector<32x32xf32>, vector<2x32xf32> -> vector<2x32xf32>
    %c0_3 = arith.constant 0 : index
    %c0_4 = arith.constant 0 : index
    %c0_5 = arith.constant 0 : index
    %3 = vector.load %arg3[%c0_3, %c0_4, %c0_5] : memref<2x128x32xf32, #tpu.memory_space<vmem>>, vector<2x128x32xf32>
    %4 = vector.shape_cast %2 : vector<2x32xf32> to vector<2x32x1xf32>
    %cst_6 = arith.constant dense<0.000000e+00> : vector<2x128x1xf32>
    %5 = tpu.matmul %3, %4, %cst_6 {dimension_numbers = #tpu.dot_dimension_numbers<[2], [1], [1], [2], [0, 0, 0, 1, 1, 2], [0], [0]>, precision = #tpu.contract_precision<fp32>} : vector<2x128x32xf32>, vector<2x32x1xf32>, vector<2x128x1xf32> -> vector<2x128x1xf32>
    %6 = vector.shape_cast %5 : vector<2x128x1xf32> to vector<2x128xf32>
    %c0_7 = arith.constant 0 : index
    %c0_8 = arith.constant 0 : index
    %7 = vector.load %arg4[%c0_7, %c0_8] : memref<2x128xf32, #tpu.memory_space<vmem>>, vector<2x128xf32>
    %8 = arith.addf %6, %7 : vector<2x128xf32>
    %cst_9 = arith.constant dense<0xFF800000> : vector<2xf32>
    %9 = vector.multi_reduction <maximumf>, %8, %cst_9 [1] : vector<2x128xf32> to vector<2xf32>
    %10 = vector.shape_cast %9 : vector<2xf32> to vector<2x1xf32>
    %11 = vector.broadcast %10 : vector<2x1xf32> to vector<2x128xf32>
    %12 = arith.subf %8, %11 : vector<2x128xf32>
    %13 = math.exp %12 : vector<2x128xf32>
    %cst_10 = arith.constant dense<0.000000e+00> : vector<2xf32>
    %14 = vector.multi_reduction <add>, %13, %cst_10 [1] : vector<2x128xf32> to vector<2xf32>
    %15 = vector.shape_cast %14 : vector<2xf32> to vector<2x1xf32>
    %16 = vector.broadcast %15 : vector<2x1xf32> to vector<2x128xf32>
    %17 = arith.divf %13, %16 : vector<2x128xf32>
    %c0_11 = arith.constant 0 : index
    %c0_12 = arith.constant 0 : index
    %18 = vector.load %arg5[%c0_11, %c0_12] : memref<2x128xf32, #tpu.memory_space<vmem>>, vector<2x128xf32>
    tpu.vector_store %arg5[%c0_11, %c0_12], %17 {strides = array<i32>} : memref<2x128xf32, #tpu.memory_space<vmem>>, vector<2x128xf32>,
    return
  }
  func.func @transform_0(%arg0: i32) -> (i32, i32) {
    %c0_i32 = arith.constant 0 : i32
    %c0_i32_0 = arith.constant 0 : i32
    return %arg0, %c0_i32 : i32, i32
  }
  func.func @transform_1(%arg0: i32) -> (i32, i32) {
    %c0_i32 = arith.constant 0 : i32
    %c0_i32_0 = arith.constant 0 : i32
    %c0_i32_1 = arith.constant 0 : i32
    return %c0_i32, %c0_i32_0 : i32, i32
  }
  func.func @transform_2(%arg0: i32) -> (i32, i32, i32) {
    %c0_i32 = arith.constant 0 : i32
    %c0_i32_0 = arith.constant 0 : i32
    %c0_i32_1 = arith.constant 0 : i32
    return %arg0, %c0_i32, %c0_i32_0 : i32, i32, i32
  }
  func.func @transform_3(%arg0: i32) -> (i32, i32) {
    %c0_i32 = arith.constant 0 : i32
    %c0_i32_0 = arith.constant 0 : i32
    return %arg0, %c0_i32 : i32, i32
  }
  func.func @transform_4(%arg0: i32) -> (i32, i32) {
    %c0_i32 = arith.constant 0 : i32
    %c0_i32_0 = arith.constant 0 : i32
    return %arg0, %c0_i32 : i32, i32
  }
}

</mosaic_0001>

<llo_original>
// kernel: tpu_custom_call.1
$region0: #{tpu_custom_call.1}
  #allocation0 [shape = 'u32[]', space=smem, size = 0x4, offset = 0x4, fixed_abs, tag = 'smem constant byte address 0x4 - core index']
  #allocation1 [shape = 'u32[72,128]{1,0:T(1,128)}', space=vmem, size = 0x9000, scoped, tag = 'internal scratch']
  %s0 = inlined_call_operand.vmem [shape: f32[2,32], index: 0, kind: input, shape index: {}]
  %s1 = inlined_call_operand.vmem [shape: f32[32,32], index: 1, kind: input, shape index: {}]
  %s2 = inlined_call_operand.vmem [shape: f32[2,128,32], index: 2, kind: input, shape index: {}]
  %s3 = inlined_call_operand.vmem [shape: f32[2,128], index: 3, kind: input, shape index: {}]
  %s4 = inlined_call_operand.hbm [shape: f32[2,128], index: 4, kind: output, shape index: {}]
  %s5 = sld [smem:[#allocation0]]
  $region26: #{tpu_custom_call.1} parent=0
    _
  %s7 = ssub.s32 1, %s5
  %s8 = scalar_select 0, %s7, %s5
  $region1: #{tpu_custom_call.1} parent=0
    #allocation2 [shape = 'u8[1024]{0}', space=vmem, size = 0x400, scoped, tag = 'output window, operand 0, single buffered']
    #allocation3 [shape = 's32[1]{0}', space=sflag, size = 0x4, scoped, tag = 'scoped memory for tpu_custom_call.1']
    %9 = vsyncpa [#allocation3], 0
    // Predicated region
    $region2: #{tpu_custom_call.1} parent=1 // pred_check
      _
    $region3: #{tpu_custom_call.1} parent=1 // pred_check_branch
      %11 = sbr.rel (0) target = $region5
    $region4: #{tpu_custom_call.1} parent=1 // pred_region
      _
    $region5: #{tpu_custom_call.1} parent=1 // pred_fallthru
      _
    // Predicated region
    $region6: #{tpu_custom_call.1} parent=1 // pred_check
      _
    $region7: #{tpu_custom_call.1} parent=1 // pred_check_branch
      %13 = sbr.rel (0) target = $region9
    $region8: #{tpu_custom_call.1} parent=1 // pred_region
      _
    $region9: #{tpu_custom_call.1} parent=1 // pred_fallthru
      _
    // Predicated region
    $region10: #{tpu_custom_call.1} parent=1 // pred_check
      _
    $region11: #{tpu_custom_call.1} parent=1 // pred_check_branch
      %15 = sbr.rel (0) target = $region13
    $region12: #{tpu_custom_call.1} parent=1 // pred_region
      _
    $region13: #{tpu_custom_call.1} parent=1 // pred_fallthru
      _
    // Predicated region
    $region14: #{tpu_custom_call.1} parent=1 // pred_check
      _
    $region15: #{tpu_custom_call.1} parent=1 // pred_check_branch
      %17 = sbr.rel (0) target = $region17
    $region16: #{tpu_custom_call.1} parent=1 // pred_region
      _
    $region17: #{tpu_custom_call.1} parent=1 // pred_fallthru
      _
    %v18 = vld [vmem:[%s0] sm:$0x3]
    %v19 = vld [vmem:[%s1] sm:$0xff]
    %v20 = vld [vmem:[%s1 + $0x8] sm:$0xff]
    %v21 = vld [vmem:[%s1 + $0x10] sm:$0xff]
    %v22 = vld [vmem:[%s1 + $0x18] sm:$0xff]
    %vm23 = vcmask 261120
    %v25 = vsel %vm23, %v18, 0
    %27 = vmatpush.msra.mxu0 0.0
    %28 = vmatpush.msra.mxu0 0.0
    %29 = vmatpush.msra.mxu0 0.0
    %30 = vmatpush.msra.mxu0 0.0
    %31 = vmatpush.msra.mxu0 0.0
    %32 = vmatpush.msra.mxu0 0.0
    %33 = vmatpush.msra.mxu0 0.0
    %34 = vmatpush.msra.mxu0 0.0
    %35 = vmatpush.msra.mxu0 0.0
    %36 = vmatpush.msra.mxu0 0.0
    %37 = vmatpush.msra.mxu0 0.0
    %38 = vmatpush.msra.mxu0 0.0
    %v39 = vand.u32 %v22, 4294901760
    %40 = vmatpush.msra.mxu0 %v39
    %v41 = vand.u32 %v21, 4294901760
    %42 = vmatpush.msra.mxu0 %v41
    %v43 = vand.u32 %v20, 4294901760
    %44 = vmatpush.msra.mxu0 %v43
    %v45 = vand.u32 %v19, 4294901760
    %46 = vmatpush.msra.mxu0 %v45
    %v47 = vand.u32 %v25, 4294901760
    %v48 = vsub.f32 %v25, %v47
    %v49 = vand.u32 %v48, 4294901760
    %v50 = vsub.f32 %v48, %v49
    %v51 = vand.u32 %v50, 4294901760
    %52 = vmatmul.f32.gmra.mxu0 %v51
    %v53 = vpop.f32.mrf.mxu0
    %v54 = vadd.f32 0.0, %v53
    %55 = vdwg.mxu0
    %56 = vmatpush.msra.mxu0 0.0
    %57 = vmatpush.msra.mxu0 0.0
    %58 = vmatpush.msra.mxu0 0.0
    %59 = vmatpush.msra.mxu0 0.0
    %60 = vmatpush.msra.mxu0 0.0
    %61 = vmatpush.msra.mxu0 0.0
    %62 = vmatpush.msra.mxu0 0.0
    %63 = vmatpush.msra.mxu0 0.0
    %64 = vmatpush.msra.mxu0 0.0
    %65 = vmatpush.msra.mxu0 0.0
    %66 = vmatpush.msra.mxu0 0.0
    %67 = vmatpush.msra.mxu0 0.0
    %v68 = vand.u32 %v22, 4294901760
    %v69 = vsub.f32 %v22, %v68
    %v70 = vand.u32 %v69, 4294901760
    %v71 = vsub.f32 %v69, %v70
    %v72 = vand.u32 %v71, 4294901760
    %73 = vmatpush.msra.mxu0 %v72
    %v74 = vand.u32 %v21, 4294901760
    %v75 = vsub.f32 %v21, %v74
    %v76 = vand.u32 %v75, 4294901760
    %v77 = vsub.f32 %v75, %v76
    %v78 = vand.u32 %v77, 4294901760
    %79 = vmatpush.msra.mxu0 %v78
    %v80 = vand.u32 %v20, 4294901760
    %v81 = vsub.f32 %v20, %v80
    %v82 = vand.u32 %v81, 4294901760
    %v83 = vsub.f32 %v81, %v82
    %v84 = vand.u32 %v83, 4294901760
    %85 = vmatpush.msra.mxu0 %v84
    %v86 = vand.u32 %v19, 4294901760
    %v87 = vsub.f32 %v19, %v86
    %v88 = vand.u32 %v87, 4294901760
    %v89 = vsub.f32 %v87, %v88
    %v90 = vand.u32 %v89, 4294901760
    %91 = vmatpush.msra.mxu0 %v90
    %v92 = vand.u32 %v25, 4294901760
    %93 = vmatmul.f32.gmra.mxu0 %v92
    %v94 = vpop.f32.mrf.mxu0
    %v95 = vadd.f32 %v54, %v94
    %96 = vdwg.mxu0
    %97 = vmatpush.msra.mxu0 0.0
    %98 = vmatpush.msra.mxu0 0.0
    %99 = vmatpush.msra.mxu0 0.0
    %100 = vmatpush.msra.mxu0 0.0
    %101 = vmatpush.msra.mxu0 0.0
    %102 = vmatpush.msra.mxu0 0.0
    %103 = vmatpush.msra.mxu0 0.0
    %104 = vmatpush.msra.mxu0 0.0
    %105 = vmatpush.msra.mxu0 0.0
    %106 = vmatpush.msra.mxu0 0.0
    %107 = vmatpush.msra.mxu0 0.0
    %108 = vmatpush.msra.mxu0 0.0
    %v109 = vand.u32 %v22, 4294901760
    %v110 = vsub.f32 %v22, %v109
    %111 = vmatpush.msra.mxu0 %v110
    %v112 = vand.u32 %v21, 4294901760
    %v113 = vsub.f32 %v21, %v112
    %114 = vmatpush.msra.mxu0 %v113
    %v115 = vand.u32 %v20, 4294901760
    %v116 = vsub.f32 %v20, %v115
    %117 = vmatpush.msra.mxu0 %v116
    %v118 = vand.u32 %v19, 4294901760
    %v119 = vsub.f32 %v19, %v118
    %120 = vmatpush.msra.mxu0 %v119
    %v121 = vand.u32 %v25, 4294901760
    %v122 = vsub.f32 %v25, %v121
    %123 = vmatmul.f32.gmra.mxu0 %v122
    %v124 = vpop.f32.mrf.mxu0
    %v125 = vadd.f32 %v95, %v124
    %126 = vdwg.mxu0
    %127 = vmatpush.msra.mxu0 0.0
    %128 = vmatpush.msra.mxu0 0.0
    %129 = vmatpush.msra.mxu0 0.0
    %130 = vmatpush.msra.mxu0 0.0
    %131 = vmatpush.msra.mxu0 0.0
    %132 = vmatpush.msra.mxu0 0.0
    %133 = vmatpush.msra.mxu0 0.0
    %134 = vmatpush.msra.mxu0 0.0
    %135 = vmatpush.msra.mxu0 0.0
    %136 = vmatpush.msra.mxu0 0.0
    %137 = vmatpush.msra.mxu0 0.0
    %138 = vmatpush.msra.mxu0 0.0
    %v139 = vand.u32 %v22, 4294901760
    %140 = vmatpush.msra.mxu0 %v139
    %v141 = vand.u32 %v21, 4294901760
    %142 = vmatpush.msra.mxu0 %v141
    %v143 = vand.u32 %v20, 4294901760
    %144 = vmatpush.msra.mxu0 %v143
    %v145 = vand.u32 %v19, 4294901760
    %146 = vmatpush.msra.mxu0 %v145
    %v147 = vand.u32 %v25, 4294901760
    %v148 = vsub.f32 %v25, %v147
    %v149 = vand.u32 %v148, 4294901760
    %150 = vmatmul.f32.gmra.mxu0 %v149
    %v151 = vpop.f32.mrf.mxu0
    %v152 = vadd.f32 %v125, %v151
    %153 = vdwg.mxu0
    %154 = vmatpush.msra.mxu0 0.0
    %155 = vmatpush.msra.mxu0 0.0
    %156 = vmatpush.msra.mxu0 0.0
    %157 = vmatpush.msra.mxu0 0.0
    %158 = vmatpush.msra.mxu0 0.0
    %159 = vmatpush.msra.mxu0 0.0
    %160 = vmatpush.msra.mxu0 0.0
    %161 = vmatpush.msra.mxu0 0.0
    %162 = vmatpush.msra.mxu0 0.0
    %163 = vmatpush.msra.mxu0 0.0
    %164 = vmatpush.msra.mxu0 0.0
    %165 = vmatpush.msra.mxu0 0.0
    %v166 = vand.u32 %v22, 4294901760
    %v167 = vsub.f32 %v22, %v166
    %v168 = vand.u32 %v167, 4294901760
    %169 = vmatpush.msra.mxu0 %v168
    %v170 = vand.u32 %v21, 4294901760
    %v171 = vsub.f32 %v21, %v170
    %v172 = vand.u32 %v171, 4294901760
    %173 = vmatpush.msra.mxu0 %v172
    %v174 = vand.u32 %v20, 4294901760
    %v175 = vsub.f32 %v20, %v174
    %v176 = vand.u32 %v175, 4294901760
    %177 = vmatpush.msra.mxu0 %v176
    %v178 = vand.u32 %v19, 4294901760
    %v179 = vsub.f32 %v19, %v178
    %v180 = vand.u32 %v179, 4294901760
    %181 = vmatpush.msra.mxu0 %v180
    %v182 = vand.u32 %v25, 4294901760
    %183 = vmatmul.f32.gmra.mxu0 %v182
    %v184 = vpop.f32.mrf.mxu0
    %v185 = vadd.f32 %v152, %v184
    %186 = vdwg.mxu0
    %187 = vmatpush.msra.mxu0 0.0
    %188 = vmatpush.msra.mxu0 0.0
    %189 = vmatpush.msra.mxu0 0.0
    %190 = vmatpush.msra.mxu0 0.0
    %191 = vmatpush.msra.mxu0 0.0
    %192 = vmatpush.msra.mxu0 0.0
    %193 = vmatpush.msra.mxu0 0.0
    %194 = vmatpush.msra.mxu0 0.0
    %195 = vmatpush.msra.mxu0 0.0
    %196 = vmatpush.msra.mxu0 0.0
    %197 = vmatpush.msra.mxu0 0.0
    %198 = vmatpush.msra.mxu0 0.0
    %v199 = vand.u32 %v22, 4294901760
    %200 = vmatpush.msra.mxu0 %v199
    %v201 = vand.u32 %v21, 4294901760
    %202 = vmatpush.msra.mxu0 %v201
    %v203 = vand.u32 %v20, 4294901760
    %204 = vmatpush.msra.mxu0 %v203
    %v205 = vand.u32 %v19, 4294901760
    %206 = vmatpush.msra.mxu0 %v205
    %v207 = vand.u32 %v25, 4294901760
    %208 = vmatmul.f32.gmra.mxu0 %v207
    %v209 = vpop.f32.mrf.mxu0
    %v210 = vadd.f32 %v185, %v209
    %211 = vdwg.mxu0
    %v212 = vld [vmem:[%s2] sm:$0xff]
    %v213 = vld [vmem:[%s2 + $0x8] sm:$0xff]
    %v214 = vld [vmem:[%s2 + $0x10] sm:$0xff]
    %v215 = vld [vmem:[%s2 + $0x18] sm:$0xff]
    %v216 = vld [vmem:[%s2 + $0x20] sm:$0xff]
    %v217 = vld [vmem:[%s2 + $0x28] sm:$0xff]
    %v218 = vld [vmem:[%s2 + $0x30] sm:$0xff]
    %v219 = vld [vmem:[%s2 + $0x38] sm:$0xff]
    %v220 = vld [vmem:[%s2 + $0x40] sm:$0xff]
    %v221 = vld [vmem:[%s2 + $0x48] sm:$0xff]
    %v222 = vld [vmem:[%s2 + $0x50] sm:$0xff]
    %v223 = vld [vmem:[%s2 + $0x58] sm:$0xff]
    %v224 = vld [vmem:[%s2 + $0x60] sm:$0xff]
    %v225 = vld [vmem:[%s2 + $0x68] sm:$0xff]
    %v226 = vld [vmem:[%s2 + $0x70] sm:$0xff]
    %v227 = vld [vmem:[%s2 + $0x78] sm:$0xff]
    %v228 = vld [vmem:[%s2 + $0x80] sm:$0xff]
    %v229 = vld [vmem:[%s2 + $0x88] sm:$0xff]
    %v230 = vld [vmem:[%s2 + $0x90] sm:$0xff]
    %v231 = vld [vmem:[%s2 + $0x98] sm:$0xff]
    %v232 = vld [vmem:[%s2 + $0xa0] sm:$0xff]
    %v233 = vld [vmem:[%s2 + $0xa8] sm:$0xff]
    %v234 = vld [vmem:[%s2 + $0xb0] sm:$0xff]
    %v235 = vld [vmem:[%s2 + $0xb8] sm:$0xff]
    %v236 = vld [vmem:[%s2 + $0xc0] sm:$0xff]
    %v237 = vld [vmem:[%s2 + $0xc8] sm:$0xff]
    %v238 = vld [vmem:[%s2 + $0xd0] sm:$0xff]
    %v239 = vld [vmem:[%s2 + $0xd8] sm:$0xff]
    %v240 = vld [vmem:[%s2 + $0xe0] sm:$0xff]
    %v241 = vld [vmem:[%s2 + $0xe8] sm:$0xff]
    %v242 = vld [vmem:[%s2 + $0xf0] sm:$0xff]
    %v243 = vld [vmem:[%s2 + $0xf8] sm:$0xff]
    %v244 = vperm.slane %v210, 0
    %v245 = vlaneseq
    %v246 = vshrl.u32 %v245, 7
    %248 = vset.pattern.permute.xlu0 %v246
    %249 = vperm.xlu0 %248, %v244
    %v250 = vpop.permute.xlu0 %249
    %v251 = vlaneseq
    %v252 = vshrl.u32 %v251, 7
    %v253 = vadd.s32 %v252, 8
    %254 = vset.pattern.permute.xlu0 %v253
    %255 = vperm.xlu0 %254, %v244
    %v256 = vpop.permute.xlu0 %255
    %v257 = vlaneseq
    %v258 = vshrl.u32 %v257, 7
    %v259 = vadd.s32 %v258, 16
    %260 = vset.pattern.permute.xlu0 %v259
    %261 = vperm.xlu0 %260, %v244
    %v262 = vpop.permute.xlu0 %261
    %v263 = vlaneseq
    %v264 = vshrl.u32 %v263, 7
    %v265 = vadd.s32 %v264, 24
    %266 = vset.pattern.permute.xlu0 %v265
    %267 = vperm.xlu0 %266, %v244
    %v268 = vpop.permute.xlu0 %267
    %v269 = vperm.slane %v210, 1
    %v270 = vlaneseq
    %v271 = vshrl.u32 %v270, 7
    %273 = vset.pattern.permute.xlu0 %v271
    %274 = vperm.xlu0 %273, %v269
    %v275 = vpop.permute.xlu0 %274
    %v276 = vlaneseq
    %v277 = vshrl.u32 %v276, 7
    %v278 = vadd.s32 %v277, 8
    %279 = vset.pattern.permute.xlu0 %v278
    %280 = vperm.xlu0 %279, %v269
    %v281 = vpop.permute.xlu0 %280
    %v282 = vlaneseq
    %v283 = vshrl.u32 %v282, 7
    %v284 = vadd.s32 %v283, 16
    %285 = vset.pattern.permute.xlu0 %v284
    %286 = vperm.xlu0 %285, %v269
    %v287 = vpop.permute.xlu0 %286
    %v288 = vlaneseq
    %v289 = vshrl.u32 %v288, 7
    %v290 = vadd.s32 %v289, 24
    %291 = vset.pattern.permute.xlu0 %v290
    %292 = vperm.xlu0 %291, %v269
    %v293 = vpop.permute.xlu0 %292
    %v295 = vsel %vm23, %v212, 0
    %v298 = vsel %vm23, %v213, 0
    %v301 = vsel %vm23, %v214, 0
    %v304 = vsel %vm23, %v215, 0
    %v307 = vsel %vm23, %v216, 0
    %v310 = vsel %vm23, %v217, 0
    %v313 = vsel %vm23, %v218, 0
    %v316 = vsel %vm23, %v219, 0
    %v319 = vsel %vm23, %v220, 0
    %v322 = vsel %vm23, %v221, 0
    %v325 = vsel %vm23, %v222, 0
    %v328 = vsel %vm23, %v223, 0
    %v331 = vsel %vm23, %v224, 0
    %v334 = vsel %vm23, %v225, 0
    %v337 = vsel %vm23, %v226, 0
    %v340 = vsel %vm23, %v227, 0
    %342 = vmatpush.msra.mxu0 0.0
    %343 = vmatpush.msra.mxu0 0.0
    %344 = vmatpush.msra.mxu0 0.0
    %345 = vmatpush.msra.mxu0 0.0
    %346 = vmatpush.msra.mxu0 0.0
    %347 = vmatpush.msra.mxu0 0.0
    %348 = vmatpush.msra.mxu0 0.0
    %349 = vmatpush.msra.mxu0 0.0
    %350 = vmatpush.msra.mxu0 0.0
    %351 = vmatpush.msra.mxu0 0.0
    %352 = vmatpush.msra.mxu0 0.0
    %353 = vmatpush.msra.mxu0 0.0
    %v354 = vand.u32 %v268, 4294901760
    %355 = vmatpush.msra.mxu0 %v354
    %v356 = vand.u32 %v262, 4294901760
    %357 = vmatpush.msra.mxu0 %v356
    %v358 = vand.u32 %v256, 4294901760
    %359 = vmatpush.msra.mxu0 %v358
    %v360 = vand.u32 %v250, 4294901760
    %361 = vmatpush.msra.mxu0 %v360
    %v362 = vand.u32 %v295, 4294901760
    %v363 = vsub.f32 %v295, %v362
    %v364 = vand.u32 %v363, 4294901760
    %v365 = vsub.f32 %v363, %v364
    %v366 = vand.u32 %v365, 4294901760
    %367 = vmatmul.f32.gmra.mxu0 %v366
    %v368 = vpop.f32.mrf.mxu0
    %v369 = vadd.f32 0.0, %v368
    %v370 = vand.u32 %v298, 4294901760
    %v371 = vsub.f32 %v298, %v370
    %v372 = vand.u32 %v371, 4294901760
    %v373 = vsub.f32 %v371, %v372
    %v374 = vand.u32 %v373, 4294901760
    %375 = vmatmul.f32.gmra.mxu0 %v374
    %v376 = vpop.f32.mrf.mxu0
    %v377 = vadd.f32 0.0, %v376
    %v378 = vand.u32 %v301, 4294901760
    %v379 = vsub.f32 %v301, %v378
    %v380 = vand.u32 %v379, 4294901760
    %v381 = vsub.f32 %v379, %v380
    %v382 = vand.u32 %v381, 4294901760
    %383 = vmatmul.f32.gmra.mxu0 %v382
    %v384 = vpop.f32.mrf.mxu0
    %v385 = vadd.f32 0.0, %v384
    %v386 = vand.u32 %v304, 4294901760
    %v387 = vsub.f32 %v304, %v386
    %v388 = vand.u32 %v387, 4294901760
    %v389 = vsub.f32 %v387, %v388
    %v390 = vand.u32 %v389, 4294901760
    %391 = vmatmul.f32.gmra.mxu0 %v390
    %v392 = vpop.f32.mrf.mxu0
    %v393 = vadd.f32 0.0, %v392
    %v394 = vand.u32 %v307, 4294901760
    %v395 = vsub.f32 %v307, %v394
    %v396 = vand.u32 %v395, 4294901760
    %v397 = vsub.f32 %v395, %v396
    %v398 = vand.u32 %v397, 4294901760
    %399 = vmatmul.f32.gmra.mxu0 %v398
    %v400 = vpop.f32.mrf.mxu0
    %v401 = vadd.f32 0.0, %v400
    %v402 = vand.u32 %v310, 4294901760
    %v403 = vsub.f32 %v310, %v402
    %v404 = vand.u32 %v403, 4294901760
    %v405 = vsub.f32 %v403, %v404
    %v406 = vand.u32 %v405, 4294901760
    %407 = vmatmul.f32.gmra.mxu0 %v406
    %v408 = vpop.f32.mrf.mxu0
    %v409 = vadd.f32 0.0, %v408
    %v410 = vand.u32 %v313, 4294901760
    %v411 = vsub.f32 %v313, %v410
    %v412 = vand.u32 %v411, 4294901760
    %v413 = vsub.f32 %v411, %v412
    %v414 = vand.u32 %v413, 4294901760
    %415 = vmatmul.f32.gmra.mxu0 %v414
    %v416 = vpop.f32.mrf.mxu0
    %v417 = vadd.f32 0.0, %v416
    %v418 = vand.u32 %v316, 4294901760
    %v419 = vsub.f32 %v316, %v418
    %v420 = vand.u32 %v419, 4294901760
    %v421 = vsub.f32 %v419, %v420
    %v422 = vand.u32 %v421, 4294901760
    %423 = vmatmul.f32.gmra.mxu0 %v422
    %v424 = vpop.f32.mrf.mxu0
    %v425 = vadd.f32 0.0, %v424
    %v426 = vand.u32 %v319, 4294901760
    %v427 = vsub.f32 %v319, %v426
    %v428 = vand.u32 %v427, 4294901760
    %v429 = vsub.f32 %v427, %v428
    %v430 = vand.u32 %v429, 4294901760
    %431 = vmatmul.f32.gmra.mxu0 %v430
    %v432 = vpop.f32.mrf.mxu0
    %v433 = vadd.f32 0.0, %v432
    %v434 = vand.u32 %v322, 4294901760
    %v435 = vsub.f32 %v322, %v434
    %v436 = vand.u32 %v435, 4294901760
    %v437 = vsub.f32 %v435, %v436
    %v438 = vand.u32 %v437, 4294901760
    %439 = vmatmul.f32.gmra.mxu0 %v438
    %v440 = vpop.f32.mrf.mxu0
    %v441 = vadd.f32 0.0, %v440
    %v442 = vand.u32 %v325, 4294901760
    %v443 = vsub.f32 %v325, %v442
    %v444 = vand.u32 %v443, 4294901760
    %v445 = vsub.f32 %v443, %v444
    %v446 = vand.u32 %v445, 4294901760
    %447 = vmatmul.f32.gmra.mxu0 %v446
    %v448 = vpop.f32.mrf.mxu0
    %v449 = vadd.f32 0.0, %v448
    %v450 = vand.u32 %v328, 4294901760
    %v451 = vsub.f32 %v328, %v450
    %v452 = vand.u32 %v451, 4294901760
    %v453 = vsub.f32 %v451, %v452
    %v454 = vand.u32 %v453, 4294901760
    %455 = vmatmul.f32.gmra.mxu0 %v454
    %v456 = vpop.f32.mrf.mxu0
    %v457 = vadd.f32 0.0, %v456
    %v458 = vand.u32 %v331, 4294901760
    %v459 = vsub.f32 %v331, %v458
    %v460 = vand.u32 %v459, 4294901760
    %v461 = vsub.f32 %v459, %v460
    %v462 = vand.u32 %v461, 4294901760
    %463 = vmatmul.f32.gmra.mxu0 %v462
    %v464 = vpop.f32.mrf.mxu0
    %v465 = vadd.f32 0.0, %v464
    %v466 = vand.u32 %v334, 4294901760
    %v467 = vsub.f32 %v334, %v466
    %v468 = vand.u32 %v467, 4294901760
    %v469 = vsub.f32 %v467, %v468
    %v470 = vand.u32 %v469, 4294901760
    %471 = vmatmul.f32.gmra.mxu0 %v470
    %v472 = vpop.f32.mrf.mxu0
    %v473 = vadd.f32 0.0, %v472
    %v474 = vand.u32 %v337, 4294901760
    %v475 = vsub.f32 %v337, %v474
    %v476 = vand.u32 %v475, 4294901760
    %v477 = vsub.f32 %v475, %v476
    %v478 = vand.u32 %v477, 4294901760
    %479 = vmatmul.f32.gmra.mxu0 %v478
    %v480 = vpop.f32.mrf.mxu0
    %v481 = vadd.f32 0.0, %v480
    %v482 = vand.u32 %v340, 4294901760
    %v483 = vsub.f32 %v340, %v482
    %v484 = vand.u32 %v483, 4294901760
    %v485 = vsub.f32 %v483, %v484
    %v486 = vand.u32 %v485, 4294901760
    %487 = vmatmul.f32.gmra.mxu0 %v486
    %v488 = vpop.f32.mrf.mxu0
    %v489 = vadd.f32 0.0, %v488
    %490 = vdwg.mxu0
    %491 = vmatpush.msra.mxu0 0.0
    %492 = vmatpush.msra.mxu0 0.0
    %493 = vmatpush.msra.mxu0 0.0
    %494 = vmatpush.msra.mxu0 0.0
    %495 = vmatpush.msra.mxu0 0.0
    %496 = vmatpush.msra.mxu0 0.0
    %497 = vmatpush.msra.mxu0 0.0
    %498 = vmatpush.msra.mxu0 0.0
    %499 = vmatpush.msra.mxu0 0.0
    %500 = vmatpush.msra.mxu0 0.0
    %501 = vmatpush.msra.mxu0 0.0
    %502 = vmatpush.msra.mxu0 0.0
    %v503 = vand.u32 %v268, 4294901760
    %v504 = vsub.f32 %v268, %v503
    %v505 = vand.u32 %v504, 4294901760
    %v506 = vsub.f32 %v504, %v505
    %v507 = vand.u32 %v506, 4294901760
    %508 = vmatpush.msra.mxu0 %v507
    %v509 = vand.u32 %v262, 4294901760
    %v510 = vsub.f32 %v262, %v509
    %v511 = vand.u32 %v510, 4294901760
    %v512 = vsub.f32 %v510, %v511
    %v513 = vand.u32 %v512, 4294901760
    %514 = vmatpush.msra.mxu0 %v513
    %v515 = vand.u32 %v256, 4294901760
    %v516 = vsub.f32 %v256, %v515
    %v517 = vand.u32 %v516, 4294901760
    %v518 = vsub.f32 %v516, %v517
    %v519 = vand.u32 %v518, 4294901760
    %520 = vmatpush.msra.mxu0 %v519
    %v521 = vand.u32 %v250, 4294901760
    %v522 = vsub.f32 %v250, %v521
    %v523 = vand.u32 %v522, 4294901760
    %v524 = vsub.f32 %v522, %v523
    %v525 = vand.u32 %v524, 4294901760
    %526 = vmatpush.msra.mxu0 %v525
    %v527 = vand.u32 %v295, 4294901760
    %528 = vmatmul.f32.gmra.mxu0 %v527
    %v529 = vpop.f32.mrf.mxu0
    %v530 = vadd.f32 %v369, %v529
    %v531 = vand.u32 %v298, 4294901760
    %532 = vmatmul.f32.gmra.mxu0 %v531
    %v533 = vpop.f32.mrf.mxu0
    %v534 = vadd.f32 %v377, %v533
    %v535 = vand.u32 %v301, 4294901760
    %536 = vmatmul.f32.gmra.mxu0 %v535
    %v537 = vpop.f32.mrf.mxu0
    %v538 = vadd.f32 %v385, %v537
    %v539 = vand.u32 %v304, 4294901760
    %540 = vmatmul.f32.gmra.mxu0 %v539
    %v541 = vpop.f32.mrf.mxu0
    %v542 = vadd.f32 %v393, %v541
    %v543 = vand.u32 %v307, 4294901760
    %544 = vmatmul.f32.gmra.mxu0 %v543
    %v545 = vpop.f32.mrf.mxu0
    %v546 = vadd.f32 %v401, %v545
    %v547 = vand.u32 %v310, 4294901760
    %548 = vmatmul.f32.gmra.mxu0 %v547
    %v549 = vpop.f32.mrf.mxu0
    %v550 = vadd.f32 %v409, %v549
    %v551 = vand.u32 %v313, 4294901760
    %552 = vmatmul.f32.gmra.mxu0 %v551
    %v553 = vpop.f32.mrf.mxu0
    %v554 = vadd.f32 %v417, %v553
    %v555 = vand.u32 %v316, 4294901760
    %556 = vmatmul.f32.gmra.mxu0 %v555
    %v557 = vpop.f32.mrf.mxu0
    %v558 = vadd.f32 %v425, %v557
    %v559 = vand.u32 %v319, 4294901760
    %560 = vmatmul.f32.gmra.mxu0 %v559
    %v561 = vpop.f32.mrf.mxu0
    %v562 = vadd.f32 %v433, %v561
    %v563 = vand.u32 %v322, 4294901760
    %564 = vmatmul.f32.gmra.mxu0 %v563
    %v565 = vpop.f32.mrf.mxu0
    %v566 = vadd.f32 %v441, %v565
    %v567 = vand.u32 %v325, 4294901760
    %568 = vmatmul.f32.gmra.mxu0 %v567
    %v569 = vpop.f32.mrf.mxu0
    %v570 = vadd.f32 %v449, %v569
    %v571 = vand.u32 %v328, 4294901760
    %572 = vmatmul.f32.gmra.mxu0 %v571
    %v573 = vpop.f32.mrf.mxu0
    %v574 = vadd.f32 %v457, %v573
    %v575 = vand.u32 %v331, 4294901760
    %576 = vmatmul.f32.gmra.mxu0 %v575
    %v577 = vpop.f32.mrf.mxu0
    %v578 = vadd.f32 %v465, %v577
    %v579 = vand.u32 %v334, 4294901760
    %580 = vmatmul.f32.gmra.mxu0 %v579
    %v581 = vpop.f32.mrf.mxu0
    %v582 = vadd.f32 %v473, %v581
    %v583 = vand.u32 %v337, 4294901760
    %584 = vmatmul.f32.gmra.mxu0 %v583
    %v585 = vpop.f32.mrf.mxu0
    %v586 = vadd.f32 %v481, %v585
    %v587 = vand.u32 %v340, 4294901760
    %588 = vmatmul.f32.gmra.mxu0 %v587
    %v589 = vpop.f32.mrf.mxu0
    %v590 = vadd.f32 %v489, %v589
    %591 = vdwg.mxu0
    %592 = vmatpush.msra.mxu0 0.0
    %593 = vmatpush.msra.mxu0 0.0
    %594 = vmatpush.msra.mxu0 0.0
    %595 = vmatpush.msra.mxu0 0.0
    %596 = vmatpush.msra.mxu0 0.0
    %597 = vmatpush.msra.mxu0 0.0
    %598 = vmatpush.msra.mxu0 0.0
    %599 = vmatpush.msra.mxu0 0.0
    %600 = vmatpush.msra.mxu0 0.0
    %601 = vmatpush.msra.mxu0 0.0
    %602 = vmatpush.msra.mxu0 0.0
    %603 = vmatpush.msra.mxu0 0.0
    %v604 = vand.u32 %v268, 4294901760
    %v605 = vsub.f32 %v268, %v604
    %606 = vmatpush.msra.mxu0 %v605
    %v607 = vand.u32 %v262, 4294901760
    %v608 = vsub.f32 %v262, %v607
    %609 = vmatpush.msra.mxu0 %v608
    %v610 = vand.u32 %v256, 4294901760
    %v611 = vsub.f32 %v256, %v610
    %612 = vmatpush.msra.mxu0 %v611
    %v613 = vand.u32 %v250, 4294901760
    %v614 = vsub.f32 %v250, %v613
    %615 = vmatpush.msra.mxu0 %v614
    %v616 = vand.u32 %v295, 4294901760
    %v617 = vsub.f32 %v295, %v616
    %618 = vmatmul.f32.gmra.mxu0 %v617
    %v619 = vpop.f32.mrf.mxu0
    %v620 = vadd.f32 %v530, %v619
    %v621 = vand.u32 %v298, 4294901760
    %v622 = vsub.f32 %v298, %v621
    %623 = vmatmul.f32.gmra.mxu0 %v622
    %v624 = vpop.f32.mrf.mxu0
    %v625 = vadd.f32 %v534, %v624
    %v626 = vand.u32 %v301, 4294901760
    %v627 = vsub.f32 %v301, %v626
    %628 = vmatmul.f32.gmra.mxu0 %v627
    %v629 = vpop.f32.mrf.mxu0
    %v630 = vadd.f32 %v538, %v629
    %v631 = vand.u32 %v304, 4294901760
    %v632 = vsub.f32 %v304, %v631
    %633 = vmatmul.f32.gmra.mxu0 %v632
    %v634 = vpop.f32.mrf.mxu0
    %v635 = vadd.f32 %v542, %v634
    %v636 = vand.u32 %v307, 4294901760
    %v637 = vsub.f32 %v307, %v636
    %638 = vmatmul.f32.gmra.mxu0 %v637
    %v639 = vpop.f32.mrf.mxu0
    %v640 = vadd.f32 %v546, %v639
    %v641 = vand.u32 %v310, 4294901760
    %v642 = vsub.f32 %v310, %v641
    %643 = vmatmul.f32.gmra.mxu0 %v642
    %v644 = vpop.f32.mrf.mxu0
    %v645 = vadd.f32 %v550, %v644
    %v646 = vand.u32 %v313, 4294901760
    %v647 = vsub.f32 %v313, %v646
    %648 = vmatmul.f32.gmra.mxu0 %v647
    %v649 = vpop.f32.mrf.mxu0
    %v650 = vadd.f32 %v554, %v649
    %v651 = vand.u32 %v316, 4294901760
    %v652 = vsub.f32 %v316, %v651
    %653 = vmatmul.f32.gmra.mxu0 %v652
    %v654 = vpop.f32.mrf.mxu0
    %v655 = vadd.f32 %v558, %v654
    %v656 = vand.u32 %v319, 4294901760
    %v657 = vsub.f32 %v319, %v656
    %658 = vmatmul.f32.gmra.mxu0 %v657
    %v659 = vpop.f32.mrf.mxu0
    %v660 = vadd.f32 %v562, %v659
    %v661 = vand.u32 %v322, 4294901760
    %v662 = vsub.f32 %v322, %v661
    %663 = vmatmul.f32.gmra.mxu0 %v662
    %v664 = vpop.f32.mrf.mxu0
    %v665 = vadd.f32 %v566, %v664
    %v666 = vand.u32 %v325, 4294901760
    %v667 = vsub.f32 %v325, %v666
    %668 = vmatmul.f32.gmra.mxu0 %v667
    %v669 = vpop.f32.mrf.mxu0
    %v670 = vadd.f32 %v570, %v669
    %v671 = vand.u32 %v328, 4294901760
    %v672 = vsub.f32 %v328, %v671
    %673 = vmatmul.f32.gmra.mxu0 %v672
    %v674 = vpop.f32.mrf.mxu0
    %v675 = vadd.f32 %v574, %v674
    %v676 = vand.u32 %v331, 4294901760
    %v677 = vsub.f32 %v331, %v676
    %678 = vmatmul.f32.gmra.mxu0 %v677
    %v679 = vpop.f32.mrf.mxu0
    %v680 = vadd.f32 %v578, %v679
    %v681 = vand.u32 %v334, 4294901760
    %v682 = vsub.f32 %v334, %v681
    %683 = vmatmul.f32.gmra.mxu0 %v682
    %v684 = vpop.f32.mrf.mxu0
    %v685 = vadd.f32 %v582, %v684
    %v686 = vand.u32 %v337, 4294901760
    %v687 = vsub.f32 %v337, %v686
    %688 = vmatmul.f32.gmra.mxu0 %v687
    %v689 = vpop.f32.mrf.mxu0
    %v690 = vadd.f32 %v586, %v689
    %v691 = vand.u32 %v340, 4294901760
    %v692 = vsub.f32 %v340, %v691
    %693 = vmatmul.f32.gmra.mxu0 %v692
    %v694 = vpop.f32.mrf.mxu0
    %v695 = vadd.f32 %v590, %v694
    %696 = vdwg.mxu0
    %697 = vmatpush.msra.mxu0 0.0
    %698 = vmatpush.msra.mxu0 0.0
    %699 = vmatpush.msra.mxu0 0.0
    %700 = vmatpush.msra.mxu0 0.0
    %701 = vmatpush.msra.mxu0 0.0
    %702 = vmatpush.msra.mxu0 0.0
    %703 = vmatpush.msra.mxu0 0.0
    %704 = vmatpush.msra.mxu0 0.0
    %705 = vmatpush.msra.mxu0 0.0
    %706 = vmatpush.msra.mxu0 0.0
    %707 = vmatpush.msra.mxu0 0.0
    %708 = vmatpush.msra.mxu0 0.0
    %v709 = vand.u32 %v268, 4294901760
    %710 = vmatpush.msra.mxu0 %v709
    %v711 = vand.u32 %v262, 4294901760
    %712 = vmatpush.msra.mxu0 %v711
    %v713 = vand.u32 %v256, 4294901760
    %714 = vmatpush.msra.mxu0 %v713
    %v715 = vand.u32 %v250, 4294901760
    %716 = vmatpush.msra.mxu0 %v715
    %v717 = vand.u32 %v295, 4294901760
    %v718 = vsub.f32 %v295, %v717
    %v719 = vand.u32 %v718, 4294901760
    %720 = vmatmul.f32.gmra.mxu0 %v719
    %v721 = vpop.f32.mrf.mxu0
    %v722 = vadd.f32 %v620, %v721
    %v723 = vand.u32 %v298, 4294901760
    %v724 = vsub.f32 %v298, %v723
    %v725 = vand.u32 %v724, 4294901760
    %726 = vmatmul.f32.gmra.mxu0 %v725
    %v727 = vpop.f32.mrf.mxu0
    %v728 = vadd.f32 %v625, %v727
    %v729 = vand.u32 %v301, 4294901760
    %v730 = vsub.f32 %v301, %v729
    %v731 = vand.u32 %v730, 4294901760
    %732 = vmatmul.f32.gmra.mxu0 %v731
    %v733 = vpop.f32.mrf.mxu0
    %v734 = vadd.f32 %v630, %v733
    %v735 = vand.u32 %v304, 4294901760
    %v736 = vsub.f32 %v304, %v735
    %v737 = vand.u32 %v736, 4294901760
    %738 = vmatmul.f32.gmra.mxu0 %v737
    %v739 = vpop.f32.mrf.mxu0
    %v740 = vadd.f32 %v635, %v739
    %v741 = vand.u32 %v307, 4294901760
    %v742 = vsub.f32 %v307, %v741
    %v743 = vand.u32 %v742, 4294901760
    %744 = vmatmul.f32.gmra.mxu0 %v743
    %v745 = vpop.f32.mrf.mxu0
    %v746 = vadd.f32 %v640, %v745
    %v747 = vand.u32 %v310, 4294901760
    %v748 = vsub.f32 %v310, %v747
    %v749 = vand.u32 %v748, 4294901760
    %750 = vmatmul.f32.gmra.mxu0 %v749
    %v751 = vpop.f32.mrf.mxu0
    %v752 = vadd.f32 %v645, %v751
    %v753 = vand.u32 %v313, 4294901760
    %v754 = vsub.f32 %v313, %v753
    %v755 = vand.u32 %v754, 4294901760
    %756 = vmatmul.f32.gmra.mxu0 %v755
    %v757 = vpop.f32.mrf.mxu0
    %v758 = vadd.f32 %v650, %v757
    %v759 = vand.u32 %v316, 4294901760
    %v760 = vsub.f32 %v316, %v759
    %v761 = vand.u32 %v760, 4294901760
    %762 = vmatmul.f32.gmra.mxu0 %v761
    %v763 = vpop.f32.mrf.mxu0
    %v764 = vadd.f32 %v655, %v763
    %v765 = vand.u32 %v319, 4294901760
    %v766 = vsub.f32 %v319, %v765
    %v767 = vand.u32 %v766, 4294901760
    %768 = vmatmul.f32.gmra.mxu0 %v767
    %v769 = vpop.f32.mrf.mxu0
    %v770 = vadd.f32 %v660, %v769
    %v771 = vand.u32 %v322, 4294901760
    %v772 = vsub.f32 %v322, %v771
    %v773 = vand.u32 %v772, 4294901760
    %774 = vmatmul.f32.gmra.mxu0 %v773
    %v775 = vpop.f32.mrf.mxu0
    %v776 = vadd.f32 %v665, %v775
    %v777 = vand.u32 %v325, 4294901760
    %v778 = vsub.f32 %v325, %v777
    %v779 = vand.u32 %v778, 4294901760
    %780 = vmatmul.f32.gmra.mxu0 %v779
    %v781 = vpop.f32.mrf.mxu0
    %v782 = vadd.f32 %v670, %v781
    %v783 = vand.u32 %v328, 4294901760
    %v784 = vsub.f32 %v328, %v783
    %v785 = vand.u32 %v784, 4294901760
    %786 = vmatmul.f32.gmra.mxu0 %v785
    %v787 = vpop.f32.mrf.mxu0
    %v788 = vadd.f32 %v675, %v787
    %v789 = vand.u32 %v331, 4294901760
    %v790 = vsub.f32 %v331, %v789
    %v791 = vand.u32 %v790, 4294901760
    %792 = vmatmul.f32.gmra.mxu0 %v791
    %v793 = vpop.f32.mrf.mxu0
    %v794 = vadd.f32 %v680, %v793
    %v795 = vand.u32 %v334, 4294901760
    %v796 = vsub.f32 %v334, %v795
    %v797 = vand.u32 %v796, 4294901760
    %798 = vmatmul.f32.gmra.mxu0 %v797
    %v799 = vpop.f32.mrf.mxu0
    %v800 = vadd.f32 %v685, %v799
    %v801 = vand.u32 %v337, 4294901760
    %v802 = vsub.f32 %v337, %v801
    %v803 = vand.u32 %v802, 4294901760
    %804 = vmatmul.f32.gmra.mxu0 %v803
    %v805 = vpop.f32.mrf.mxu0
    %v806 = vadd.f32 %v690, %v805
    %v807 = vand.u32 %v340, 4294901760
    %v808 = vsub.f32 %v340, %v807
    %v809 = vand.u32 %v808, 4294901760
    %810 = vmatmul.f32.gmra.mxu0 %v809
    %v811 = vpop.f32.mrf.mxu0
    %v812 = vadd.f32 %v695, %v811
    %813 = vdwg.mxu0
    %814 = vmatpush.msra.mxu0 0.0
    %815 = vmatpush.msra.mxu0 0.0
    %816 = vmatpush.msra.mxu0 0.0
    %817 = vmatpush.msra.mxu0 0.0
    %818 = vmatpush.msra.mxu0 0.0
    %819 = vmatpush.msra.mxu0 0.0
    %820 = vmatpush.msra.mxu0 0.0
    %821 = vmatpush.msra.mxu0 0.0
    %822 = vmatpush.msra.mxu0 0.0
    %823 = vmatpush.msra.mxu0 0.0
    %824 = vmatpush.msra.mxu0 0.0
    %825 = vmatpush.msra.mxu0 0.0
    %v826 = vand.u32 %v268, 4294901760
    %v827 = vsub.f32 %v268, %v826
    %v828 = vand.u32 %v827, 4294901760
    %829 = vmatpush.msra.mxu0 %v828
    %v830 = vand.u32 %v262, 4294901760
    %v831 = vsub.f32 %v262, %v830
    %v832 = vand.u32 %v831, 4294901760
    %833 = vmatpush.msra.mxu0 %v832
    %v834 = vand.u32 %v256, 4294901760
    %v835 = vsub.f32 %v256, %v834
    %v836 = vand.u32 %v835, 4294901760
    %837 = vmatpush.msra.mxu0 %v836
    %v838 = vand.u32 %v250, 4294901760
    %v839 = vsub.f32 %v250, %v838
    %v840 = vand.u32 %v839, 4294901760
    %841 = vmatpush.msra.mxu0 %v840
    %v842 = vand.u32 %v295, 4294901760
    %843 = vmatmul.f32.gmra.mxu0 %v842
    %v844 = vpop.f32.mrf.mxu0
    %v845 = vadd.f32 %v722, %v844
    %v846 = vand.u32 %v298, 4294901760
    %847 = vmatmul.f32.gmra.mxu0 %v846
    %v848 = vpop.f32.mrf.mxu0
    %v849 = vadd.f32 %v728, %v848
    %v850 = vand.u32 %v301, 4294901760
    %851 = vmatmul.f32.gmra.mxu0 %v850
    %v852 = vpop.f32.mrf.mxu0
    %v853 = vadd.f32 %v734, %v852
    %v854 = vand.u32 %v304, 4294901760
    %855 = vmatmul.f32.gmra.mxu0 %v854
    %v856 = vpop.f32.mrf.mxu0
    %v857 = vadd.f32 %v740, %v856
    %v858 = vand.u32 %v307, 4294901760
    %859 = vmatmul.f32.gmra.mxu0 %v858
    %v860 = vpop.f32.mrf.mxu0
    %v861 = vadd.f32 %v746, %v860
    %v862 = vand.u32 %v310, 4294901760
    %863 = vmatmul.f32.gmra.mxu0 %v862
    %v864 = vpop.f32.mrf.mxu0
    %v865 = vadd.f32 %v752, %v864
    %v866 = vand.u32 %v313, 4294901760
    %867 = vmatmul.f32.gmra.mxu0 %v866
    %v868 = vpop.f32.mrf.mxu0
    %v869 = vadd.f32 %v758, %v868
    %v870 = vand.u32 %v316, 4294901760
    %871 = vmatmul.f32.gmra.mxu0 %v870
    %v872 = vpop.f32.mrf.mxu0
    %v873 = vadd.f32 %v764, %v872
    %v874 = vand.u32 %v319, 4294901760
    %875 = vmatmul.f32.gmra.mxu0 %v874
    %v876 = vpop.f32.mrf.mxu0
    %v877 = vadd.f32 %v770, %v876
    %v878 = vand.u32 %v322, 4294901760
    %879 = vmatmul.f32.gmra.mxu0 %v878
    %v880 = vpop.f32.mrf.mxu0
    %v881 = vadd.f32 %v776, %v880
    %v882 = vand.u32 %v325, 4294901760
    %883 = vmatmul.f32.gmra.mxu0 %v882
    %v884 = vpop.f32.mrf.mxu0
    %v885 = vadd.f32 %v782, %v884
    %v886 = vand.u32 %v328, 4294901760
    %887 = vmatmul.f32.gmra.mxu0 %v886
    %v888 = vpop.f32.mrf.mxu0
    %v889 = vadd.f32 %v788, %v888
    %v890 = vand.u32 %v331, 4294901760
    %891 = vmatmul.f32.gmra.mxu0 %v890
    %v892 = vpop.f32.mrf.mxu0
    %v893 = vadd.f32 %v794, %v892
    %v894 = vand.u32 %v334, 4294901760
    %895 = vmatmul.f32.gmra.mxu0 %v894
    %v896 = vpop.f32.mrf.mxu0
    %v897 = vadd.f32 %v800, %v896
    %v898 = vand.u32 %v337, 4294901760
    %899 = vmatmul.f32.gmra.mxu0 %v898
    %v900 = vpop.f32.mrf.mxu0
    %v901 = vadd.f32 %v806, %v900
    %v902 = vand.u32 %v340, 4294901760
    %903 = vmatmul.f32.gmra.mxu0 %v902
    %v904 = vpop.f32.mrf.mxu0
    %v905 = vadd.f32 %v812, %v904
    %906 = vdwg.mxu0
    %907 = vmatpush.msra.mxu0 0.0
    %908 = vmatpush.msra.mxu0 0.0
    %909 = vmatpush.msra.mxu0 0.0
    %910 = vmatpush.msra.mxu0 0.0
    %911 = vmatpush.msra.mxu0 0.0
    %912 = vmatpush.msra.mxu0 0.0
    %913 = vmatpush.msra.mxu0 0.0
    %914 = vmatpush.msra.mxu0 0.0
    %915 = vmatpush.msra.mxu0 0.0
    %916 = vmatpush.msra.mxu0 0.0
    %917 = vmatpush.msra.mxu0 0.0
    %918 = vmatpush.msra.mxu0 0.0
    %v919 = vand.u32 %v268, 4294901760
    %920 = vmatpush.msra.mxu0 %v919
    %v921 = vand.u32 %v262, 4294901760
    %922 = vmatpush.msra.mxu0 %v921
    %v923 = vand.u32 %v256, 4294901760
    %924 = vmatpush.msra.mxu0 %v923
    %v925 = vand.u32 %v250, 4294901760
    %926 = vmatpush.msra.mxu0 %v925
    %v927 = vand.u32 %v295, 4294901760
    %928 = vmatmul.f32.gmra.mxu0 %v927
    %v929 = vpop.f32.mrf.mxu0
    %v930 = vadd.f32 %v845, %v929
    %v931 = vand.u32 %v298, 4294901760
    %932 = vmatmul.f32.gmra.mxu0 %v931
    %v933 = vpop.f32.mrf.mxu0
    %v934 = vadd.f32 %v849, %v933
    %v935 = vand.u32 %v301, 4294901760
    %936 = vmatmul.f32.gmra.mxu0 %v935
    %v937 = vpop.f32.mrf.mxu0
    %v938 = vadd.f32 %v853, %v937
    %v939 = vand.u32 %v304, 4294901760
    %940 = vmatmul.f32.gmra.mxu0 %v939
    %v941 = vpop.f32.mrf.mxu0
    %v942 = vadd.f32 %v857, %v941
    %v943 = vand.u32 %v307, 4294901760
    %944 = vmatmul.f32.gmra.mxu0 %v943
    %v945 = vpop.f32.mrf.mxu0
    %v946 = vadd.f32 %v861, %v945
    %v947 = vand.u32 %v310, 4294901760
    %948 = vmatmul.f32.gmra.mxu0 %v947
    %v949 = vpop.f32.mrf.mxu0
    %v950 = vadd.f32 %v865, %v949
    %v951 = vand.u32 %v313, 4294901760
    %952 = vmatmul.f32.gmra.mxu0 %v951
    %v953 = vpop.f32.mrf.mxu0
    %v954 = vadd.f32 %v869, %v953
    %v955 = vand.u32 %v316, 4294901760
    %956 = vmatmul.f32.gmra.mxu0 %v955
    %v957 = vpop.f32.mrf.mxu0
    %v958 = vadd.f32 %v873, %v957
    %v959 = vand.u32 %v319, 4294901760
    %960 = vmatmul.f32.gmra.mxu0 %v959
    %v961 = vpop.f32.mrf.mxu0
    %v962 = vadd.f32 %v877, %v961
    %v963 = vand.u32 %v322, 4294901760
    %964 = vmatmul.f32.gmra.mxu0 %v963
    %v965 = vpop.f32.mrf.mxu0
    %v966 = vadd.f32 %v881, %v965
    %v967 = vand.u32 %v325, 4294901760
    %968 = vmatmul.f32.gmra.mxu0 %v967
    %v969 = vpop.f32.mrf.mxu0
    %v970 = vadd.f32 %v885, %v969
    %v971 = vand.u32 %v328, 4294901760
    %972 = vmatmul.f32.gmra.mxu0 %v971
    %v973 = vpop.f32.mrf.mxu0
    %v974 = vadd.f32 %v889, %v973
    %v975 = vand.u32 %v331, 4294901760
    %976 = vmatmul.f32.gmra.mxu0 %v975
    %v977 = vpop.f32.mrf.mxu0
    %v978 = vadd.f32 %v893, %v977
    %v979 = vand.u32 %v334, 4294901760
    %980 = vmatmul.f32.gmra.mxu0 %v979
    %v981 = vpop.f32.mrf.mxu0
    %v982 = vadd.f32 %v897, %v981
    %v983 = vand.u32 %v337, 4294901760
    %984 = vmatmul.f32.gmra.mxu0 %v983
    %v985 = vpop.f32.mrf.mxu0
    %v986 = vadd.f32 %v901, %v985
    %v987 = vand.u32 %v340, 4294901760
    %988 = vmatmul.f32.gmra.mxu0 %v987
    %v989 = vpop.f32.mrf.mxu0
    %v990 = vadd.f32 %v905, %v989
    %991 = vdwg.mxu0
    %v993 = vsel %vm23, %v228, 0
    %v996 = vsel %vm23, %v229, 0
    %v999 = vsel %vm23, %v230, 0
    %v1002 = vsel %vm23, %v231, 0
    %v1005 = vsel %vm23, %v232, 0
    %v1008 = vsel %vm23, %v233, 0
    %v1011 = vsel %vm23, %v234, 0
    %v1014 = vsel %vm23, %v235, 0
    %v1017 = vsel %vm23, %v236, 0
    %v1020 = vsel %vm23, %v237, 0
    %v1023 = vsel %vm23, %v238, 0
    %v1026 = vsel %vm23, %v239, 0
    %v1029 = vsel %vm23, %v240, 0
    %v1032 = vsel %vm23, %v241, 0
    %v1035 = vsel %vm23, %v242, 0
    %v1038 = vsel %vm23, %v243, 0
    %1040 = vmatpush.msra.mxu0 0.0
    %1041 = vmatpush.msra.mxu0 0.0
    %1042 = vmatpush.msra.mxu0 0.0
    %1043 = vmatpush.msra.mxu0 0.0
    %1044 = vmatpush.msra.mxu0 0.0
    %1045 = vmatpush.msra.mxu0 0.0
    %1046 = vmatpush.msra.mxu0 0.0
    %1047 = vmatpush.msra.mxu0 0.0
    %1048 = vmatpush.msra.mxu0 0.0
    %1049 = vmatpush.msra.mxu0 0.0
    %1050 = vmatpush.msra.mxu0 0.0
    %1051 = vmatpush.msra.mxu0 0.0
    %v1052 = vand.u32 %v293, 4294901760
    %1053 = vmatpush.msra.mxu0 %v1052
    %v1054 = vand.u32 %v287, 4294901760
    %1055 = vmatpush.msra.mxu0 %v1054
    %v1056 = vand.u32 %v281, 4294901760
    %1057 = vmatpush.msra.mxu0 %v1056
    %v1058 = vand.u32 %v275, 4294901760
    %1059 = vmatpush.msra.mxu0 %v1058
    %v1060 = vand.u32 %v993, 4294901760
    %v1061 = vsub.f32 %v993, %v1060
    %v1062 = vand.u32 %v1061, 4294901760
    %v1063 = vsub.f32 %v1061, %v1062
    %v1064 = vand.u32 %v1063, 4294901760
    %1065 = vmatmul.f32.gmra.mxu0 %v1064
    %v1066 = vpop.f32.mrf.mxu0
    %v1067 = vadd.f32 0.0, %v1066
    %v1068 = vand.u32 %v996, 4294901760
    %v1069 = vsub.f32 %v996, %v1068
    %v1070 = vand.u32 %v1069, 4294901760
    %v1071 = vsub.f32 %v1069, %v1070
    %v1072 = vand.u32 %v1071, 4294901760
    %1073 = vmatmul.f32.gmra.mxu0 %v1072
    %v1074 = vpop.f32.mrf.mxu0
    %v1075 = vadd.f32 0.0, %v1074
    %v1076 = vand.u32 %v999, 4294901760
    %v1077 = vsub.f32 %v999, %v1076
    %v1078 = vand.u32 %v1077, 4294901760
    %v1079 = vsub.f32 %v1077, %v1078
    %v1080 = vand.u32 %v1079, 4294901760
    %1081 = vmatmul.f32.gmra.mxu0 %v1080
    %v1082 = vpop.f32.mrf.mxu0
    %v1083 = vadd.f32 0.0, %v1082
    %v1084 = vand.u32 %v1002, 4294901760
    %v1085 = vsub.f32 %v1002, %v1084
    %v1086 = vand.u32 %v1085, 4294901760
    %v1087 = vsub.f32 %v1085, %v1086
    %v1088 = vand.u32 %v1087, 4294901760
    %1089 = vmatmul.f32.gmra.mxu0 %v1088
    %v1090 = vpop.f32.mrf.mxu0
    %v1091 = vadd.f32 0.0, %v1090
    %v1092 = vand.u32 %v1005, 4294901760
    %v1093 = vsub.f32 %v1005, %v1092
    %v1094 = vand.u32 %v1093, 4294901760
    %v1095 = vsub.f32 %v1093, %v1094
    %v1096 = vand.u32 %v1095, 4294901760
    %1097 = vmatmul.f32.gmra.mxu0 %v1096
    %v1098 = vpop.f32.mrf.mxu0
    %v1099 = vadd.f32 0.0, %v1098
    %v1100 = vand.u32 %v1008, 4294901760
    %v1101 = vsub.f32 %v1008, %v1100
    %v1102 = vand.u32 %v1101, 4294901760
    %v1103 = vsub.f32 %v1101, %v1102
    %v1104 = vand.u32 %v1103, 4294901760
    %1105 = vmatmul.f32.gmra.mxu0 %v1104
    %v1106 = vpop.f32.mrf.mxu0
    %v1107 = vadd.f32 0.0, %v1106
    %v1108 = vand.u32 %v1011, 4294901760
    %v1109 = vsub.f32 %v1011, %v1108
    %v1110 = vand.u32 %v1109, 4294901760
    %v1111 = vsub.f32 %v1109, %v1110
    %v1112 = vand.u32 %v1111, 4294901760
    %1113 = vmatmul.f32.gmra.mxu0 %v1112
    %v1114 = vpop.f32.mrf.mxu0
    %v1115 = vadd.f32 0.0, %v1114
    %v1116 = vand.u32 %v1014, 4294901760
    %v1117 = vsub.f32 %v1014, %v1116
    %v1118 = vand.u32 %v1117, 4294901760
    %v1119 = vsub.f32 %v1117, %v1118
    %v1120 = vand.u32 %v1119, 4294901760
    %1121 = vmatmul.f32.gmra.mxu0 %v1120
    %v1122 = vpop.f32.mrf.mxu0
    %v1123 = vadd.f32 0.0, %v1122
    %v1124 = vand.u32 %v1017, 4294901760
    %v1125 = vsub.f32 %v1017, %v1124
    %v1126 = vand.u32 %v1125, 4294901760
    %v1127 = vsub.f32 %v1125, %v1126
    %v1128 = vand.u32 %v1127, 4294901760
    %1129 = vmatmul.f32.gmra.mxu0 %v1128
    %v1130 = vpop.f32.mrf.mxu0
    %v1131 = vadd.f32 0.0, %v1130
    %v1132 = vand.u32 %v1020, 4294901760
    %v1133 = vsub.f32 %v1020, %v1132
    %v1134 = vand.u32 %v1133, 4294901760
    %v1135 = vsub.f32 %v1133, %v1134
    %v1136 = vand.u32 %v1135, 4294901760
    %1137 = vmatmul.f32.gmra.mxu0 %v1136
    %v1138 = vpop.f32.mrf.mxu0
    %v1139 = vadd.f32 0.0, %v1138
    %v1140 = vand.u32 %v1023, 4294901760
    %v1141 = vsub.f32 %v1023, %v1140
    %v1142 = vand.u32 %v1141, 4294901760
    %v1143 = vsub.f32 %v1141, %v1142
    %v1144 = vand.u32 %v1143, 4294901760
    %1145 = vmatmul.f32.gmra.mxu0 %v1144
    %v1146 = vpop.f32.mrf.mxu0
    %v1147 = vadd.f32 0.0, %v1146
    %v1148 = vand.u32 %v1026, 4294901760
    %v1149 = vsub.f32 %v1026, %v1148
    %v1150 = vand.u32 %v1149, 4294901760
    %v1151 = vsub.f32 %v1149, %v1150
    %v1152 = vand.u32 %v1151, 4294901760
    %1153 = vmatmul.f32.gmra.mxu0 %v1152
    %v1154 = vpop.f32.mrf.mxu0
    %v1155 = vadd.f32 0.0, %v1154
    %v1156 = vand.u32 %v1029, 4294901760
    %v1157 = vsub.f32 %v1029, %v1156
    %v1158 = vand.u32 %v1157, 4294901760
    %v1159 = vsub.f32 %v1157, %v1158
    %v1160 = vand.u32 %v1159, 4294901760
    %1161 = vmatmul.f32.gmra.mxu0 %v1160
    %v1162 = vpop.f32.mrf.mxu0
    %v1163 = vadd.f32 0.0, %v1162
    %v1164 = vand.u32 %v1032, 4294901760
    %v1165 = vsub.f32 %v1032, %v1164
    %v1166 = vand.u32 %v1165, 4294901760
    %v1167 = vsub.f32 %v1165, %v1166
    %v1168 = vand.u32 %v1167, 4294901760
    %1169 = vmatmul.f32.gmra.mxu0 %v1168
    %v1170 = vpop.f32.mrf.mxu0
    %v1171 = vadd.f32 0.0, %v1170
    %v1172 = vand.u32 %v1035, 4294901760
    %v1173 = vsub.f32 %v1035, %v1172
    %v1174 = vand.u32 %v1173, 4294901760
    %v1175 = vsub.f32 %v1173, %v1174
    %v1176 = vand.u32 %v1175, 4294901760
    %1177 = vmatmul.f32.gmra.mxu0 %v1176
    %v1178 = vpop.f32.mrf.mxu0
    %v1179 = vadd.f32 0.0, %v1178
    %v1180 = vand.u32 %v1038, 4294901760
    %v1181 = vsub.f32 %v1038, %v1180
    %v1182 = vand.u32 %v1181, 4294901760
    %v1183 = vsub.f32 %v1181, %v1182
    %v1184 = vand.u32 %v1183, 4294901760
    %1185 = vmatmul.f32.gmra.mxu0 %v1184
    %v1186 = vpop.f32.mrf.mxu0
    %v1187 = vadd.f32 0.0, %v1186
    %1188 = vdwg.mxu0
    %1189 = vmatpush.msra.mxu0 0.0
    %1190 = vmatpush.msra.mxu0 0.0
    %1191 = vmatpush.msra.mxu0 0.0
    %1192 = vmatpush.msra.mxu0 0.0
    %1193 = vmatpush.msra.mxu0 0.0
    %1194 = vmatpush.msra.mxu0 0.0
    %1195 = vmatpush.msra.mxu0 0.0
    %1196 = vmatpush.msra.mxu0 0.0
    %1197 = vmatpush.msra.mxu0 0.0
    %1198 = vmatpush.msra.mxu0 0.0
    %1199 = vmatpush.msra.mxu0 0.0
    %1200 = vmatpush.msra.mxu0 0.0
    %v1201 = vand.u32 %v293, 4294901760
    %v1202 = vsub.f32 %v293, %v1201
    %v1203 = vand.u32 %v1202, 4294901760
    %v1204 = vsub.f32 %v1202, %v1203
    %v1205 = vand.u32 %v1204, 4294901760
    %1206 = vmatpush.msra.mxu0 %v1205
    %v1207 = vand.u32 %v287, 4294901760
    %v1208 = vsub.f32 %v287, %v1207
    %v1209 = vand.u32 %v1208, 4294901760
    %v1210 = vsub.f32 %v1208, %v1209
    %v1211 = vand.u32 %v1210, 4294901760
    %1212 = vmatpush.msra.mxu0 %v1211
    %v1213 = vand.u32 %v281, 4294901760
    %v1214 = vsub.f32 %v281, %v1213
    %v1215 = vand.u32 %v1214, 4294901760
    %v1216 = vsub.f32 %v1214, %v1215
    %v1217 = vand.u32 %v1216, 4294901760
    %1218 = vmatpush.msra.mxu0 %v1217
    %v1219 = vand.u32 %v275, 4294901760
    %v1220 = vsub.f32 %v275, %v1219
    %v1221 = vand.u32 %v1220, 4294901760
    %v1222 = vsub.f32 %v1220, %v1221
    %v1223 = vand.u32 %v1222, 4294901760
    %1224 = vmatpush.msra.mxu0 %v1223
    %v1225 = vand.u32 %v993, 4294901760
    %1226 = vmatmul.f32.gmra.mxu0 %v1225
    %v1227 = vpop.f32.mrf.mxu0
    %v1228 = vadd.f32 %v1067, %v1227
    %v1229 = vand.u32 %v996, 4294901760
    %1230 = vmatmul.f32.gmra.mxu0 %v1229
    %v1231 = vpop.f32.mrf.mxu0
    %v1232 = vadd.f32 %v1075, %v1231
    %v1233 = vand.u32 %v999, 4294901760
    %1234 = vmatmul.f32.gmra.mxu0 %v1233
    %v1235 = vpop.f32.mrf.mxu0
    %v1236 = vadd.f32 %v1083, %v1235
    %v1237 = vand.u32 %v1002, 4294901760
    %1238 = vmatmul.f32.gmra.mxu0 %v1237
    %v1239 = vpop.f32.mrf.mxu0
    %v1240 = vadd.f32 %v1091, %v1239
    %v1241 = vand.u32 %v1005, 4294901760
    %1242 = vmatmul.f32.gmra.mxu0 %v1241
    %v1243 = vpop.f32.mrf.mxu0
    %v1244 = vadd.f32 %v1099, %v1243
    %v1245 = vand.u32 %v1008, 4294901760
    %1246 = vmatmul.f32.gmra.mxu0 %v1245
    %v1247 = vpop.f32.mrf.mxu0
    %v1248 = vadd.f32 %v1107, %v1247
    %v1249 = vand.u32 %v1011, 4294901760
    %1250 = vmatmul.f32.gmra.mxu0 %v1249
    %v1251 = vpop.f32.mrf.mxu0
    %v1252 = vadd.f32 %v1115, %v1251
    %v1253 = vand.u32 %v1014, 4294901760
    %1254 = vmatmul.f32.gmra.mxu0 %v1253
    %v1255 = vpop.f32.mrf.mxu0
    %v1256 = vadd.f32 %v1123, %v1255
    %v1257 = vand.u32 %v1017, 4294901760
    %1258 = vmatmul.f32.gmra.mxu0 %v1257
    %v1259 = vpop.f32.mrf.mxu0
    %v1260 = vadd.f32 %v1131, %v1259
    %v1261 = vand.u32 %v1020, 4294901760
    %1262 = vmatmul.f32.gmra.mxu0 %v1261
    %v1263 = vpop.f32.mrf.mxu0
    %v1264 = vadd.f32 %v1139, %v1263
    %v1265 = vand.u32 %v1023, 4294901760
    %1266 = vmatmul.f32.gmra.mxu0 %v1265
    %v1267 = vpop.f32.mrf.mxu0
    %v1268 = vadd.f32 %v1147, %v1267
    %v1269 = vand.u32 %v1026, 4294901760
    %1270 = vmatmul.f32.gmra.mxu0 %v1269
    %v1271 = vpop.f32.mrf.mxu0
    %v1272 = vadd.f32 %v1155, %v1271
    %v1273 = vand.u32 %v1029, 4294901760
    %1274 = vmatmul.f32.gmra.mxu0 %v1273
    %v1275 = vpop.f32.mrf.mxu0
    %v1276 = vadd.f32 %v1163, %v1275
    %v1277 = vand.u32 %v1032, 4294901760
    %1278 = vmatmul.f32.gmra.mxu0 %v1277
    %v1279 = vpop.f32.mrf.mxu0
    %v1280 = vadd.f32 %v1171, %v1279
    %v1281 = vand.u32 %v1035, 4294901760
    %1282 = vmatmul.f32.gmra.mxu0 %v1281
    %v1283 = vpop.f32.mrf.mxu0
    %v1284 = vadd.f32 %v1179, %v1283
    %v1285 = vand.u32 %v1038, 4294901760
    %1286 = vmatmul.f32.gmra.mxu0 %v1285
    %v1287 = vpop.f32.mrf.mxu0
    %v1288 = vadd.f32 %v1187, %v1287
    %1289 = vdwg.mxu0
    %1290 = vmatpush.msra.mxu0 0.0
    %1291 = vmatpush.msra.mxu0 0.0
    %1292 = vmatpush.msra.mxu0 0.0
    %1293 = vmatpush.msra.mxu0 0.0
    %1294 = vmatpush.msra.mxu0 0.0
    %1295 = vmatpush.msra.mxu0 0.0
    %1296 = vmatpush.msra.mxu0 0.0
    %1297 = vmatpush.msra.mxu0 0.0
    %1298 = vmatpush.msra.mxu0 0.0
    %1299 = vmatpush.msra.mxu0 0.0
    %1300 = vmatpush.msra.mxu0 0.0
    %1301 = vmatpush.msra.mxu0 0.0
    %v1302 = vand.u32 %v293, 4294901760
    %v1303 = vsub.f32 %v293, %v1302
    %1304 = vmatpush.msra.mxu0 %v1303
    %v1305 = vand.u32 %v287, 4294901760
    %v1306 = vsub.f32 %v287, %v1305
    %1307 = vmatpush.msra.mxu0 %v1306
    %v1308 = vand.u32 %v281, 4294901760
    %v1309 = vsub.f32 %v281, %v1308
    %1310 = vmatpush.msra.mxu0 %v1309
    %v1311 = vand.u32 %v275, 4294901760
    %v1312 = vsub.f32 %v275, %v1311
    %1313 = vmatpush.msra.mxu0 %v1312
    %v1314 = vand.u32 %v993, 4294901760
    %v1315 = vsub.f32 %v993, %v1314
    %1316 = vmatmul.f32.gmra.mxu0 %v1315
    %v1317 = vpop.f32.mrf.mxu0
    %v1318 = vadd.f32 %v1228, %v1317
    %v1319 = vand.u32 %v996, 4294901760
    %v1320 = vsub.f32 %v996, %v1319
    %1321 = vmatmul.f32.gmra.mxu0 %v1320
    %v1322 = vpop.f32.mrf.mxu0
    %v1323 = vadd.f32 %v1232, %v1322
    %v1324 = vand.u32 %v999, 4294901760
    %v1325 = vsub.f32 %v999, %v1324
    %1326 = vmatmul.f32.gmra.mxu0 %v1325
    %v1327 = vpop.f32.mrf.mxu0
    %v1328 = vadd.f32 %v1236, %v1327
    %v1329 = vand.u32 %v1002, 4294901760
    %v1330 = vsub.f32 %v1002, %v1329
    %1331 = vmatmul.f32.gmra.mxu0 %v1330
    %v1332 = vpop.f32.mrf.mxu0
    %v1333 = vadd.f32 %v1240, %v1332
    %v1334 = vand.u32 %v1005, 4294901760
    %v1335 = vsub.f32 %v1005, %v1334
    %1336 = vmatmul.f32.gmra.mxu0 %v1335
    %v1337 = vpop.f32.mrf.mxu0
    %v1338 = vadd.f32 %v1244, %v1337
    %v1339 = vand.u32 %v1008, 4294901760
    %v1340 = vsub.f32 %v1008, %v1339
    %1341 = vmatmul.f32.gmra.mxu0 %v1340
    %v1342 = vpop.f32.mrf.mxu0
    %v1343 = vadd.f32 %v1248, %v1342
    %v1344 = vand.u32 %v1011, 4294901760
    %v1345 = vsub.f32 %v1011, %v1344
    %1346 = vmatmul.f32.gmra.mxu0 %v1345
    %v1347 = vpop.f32.mrf.mxu0
    %v1348 = vadd.f32 %v1252, %v1347
    %v1349 = vand.u32 %v1014, 4294901760
    %v1350 = vsub.f32 %v1014, %v1349
    %1351 = vmatmul.f32.gmra.mxu0 %v1350
    %v1352 = vpop.f32.mrf.mxu0
    %v1353 = vadd.f32 %v1256, %v1352
    %v1354 = vand.u32 %v1017, 4294901760
    %v1355 = vsub.f32 %v1017, %v1354
    %1356 = vmatmul.f32.gmra.mxu0 %v1355
    %v1357 = vpop.f32.mrf.mxu0
    %v1358 = vadd.f32 %v1260, %v1357
    %v1359 = vand.u32 %v1020, 4294901760
    %v1360 = vsub.f32 %v1020, %v1359
    %1361 = vmatmul.f32.gmra.mxu0 %v1360
    %v1362 = vpop.f32.mrf.mxu0
    %v1363 = vadd.f32 %v1264, %v1362
    %v1364 = vand.u32 %v1023, 4294901760
    %v1365 = vsub.f32 %v1023, %v1364
    %1366 = vmatmul.f32.gmra.mxu0 %v1365
    %v1367 = vpop.f32.mrf.mxu0
    %v1368 = vadd.f32 %v1268, %v1367
    %v1369 = vand.u32 %v1026, 4294901760
    %v1370 = vsub.f32 %v1026, %v1369
    %1371 = vmatmul.f32.gmra.mxu0 %v1370
    %v1372 = vpop.f32.mrf.mxu0
    %v1373 = vadd.f32 %v1272, %v1372
    %v1374 = vand.u32 %v1029, 4294901760
    %v1375 = vsub.f32 %v1029, %v1374
    %1376 = vmatmul.f32.gmra.mxu0 %v1375
    %v1377 = vpop.f32.mrf.mxu0
    %v1378 = vadd.f32 %v1276, %v1377
    %v1379 = vand.u32 %v1032, 4294901760
    %v1380 = vsub.f32 %v1032, %v1379
    %1381 = vmatmul.f32.gmra.mxu0 %v1380
    %v1382 = vpop.f32.mrf.mxu0
    %v1383 = vadd.f32 %v1280, %v1382
    %v1384 = vand.u32 %v1035, 4294901760
    %v1385 = vsub.f32 %v1035, %v1384
    %1386 = vmatmul.f32.gmra.mxu0 %v1385
    %v1387 = vpop.f32.mrf.mxu0
    %v1388 = vadd.f32 %v1284, %v1387
    %v1389 = vand.u32 %v1038, 4294901760
    %v1390 = vsub.f32 %v1038, %v1389
    %1391 = vmatmul.f32.gmra.mxu0 %v1390
    %v1392 = vpop.f32.mrf.mxu0
    %v1393 = vadd.f32 %v1288, %v1392
    %1394 = vdwg.mxu0
    %1395 = vmatpush.msra.mxu0 0.0
    %1396 = vmatpush.msra.mxu0 0.0
    %1397 = vmatpush.msra.mxu0 0.0
    %1398 = vmatpush.msra.mxu0 0.0
    %1399 = vmatpush.msra.mxu0 0.0
    %1400 = vmatpush.msra.mxu0 0.0
    %1401 = vmatpush.msra.mxu0 0.0
    %1402 = vmatpush.msra.mxu0 0.0
    %1403 = vmatpush.msra.mxu0 0.0
    %1404 = vmatpush.msra.mxu0 0.0
    %1405 = vmatpush.msra.mxu0 0.0
    %1406 = vmatpush.msra.mxu0 0.0
    %v1407 = vand.u32 %v293, 4294901760
    %1408 = vmatpush.msra.mxu0 %v1407
    %v1409 = vand.u32 %v287, 4294901760
    %1410 = vmatpush.msra.mxu0 %v1409
    %v1411 = vand.u32 %v281, 4294901760
    %1412 = vmatpush.msra.mxu0 %v1411
    %v1413 = vand.u32 %v275, 4294901760
    %1414 = vmatpush.msra.mxu0 %v1413
    %v1415 = vand.u32 %v993, 4294901760
    %v1416 = vsub.f32 %v993, %v1415
    %v1417 = vand.u32 %v1416, 4294901760
    %1418 = vmatmul.f32.gmra.mxu0 %v1417
    %v1419 = vpop.f32.mrf.mxu0
    %v1420 = vadd.f32 %v1318, %v1419
    %v1421 = vand.u32 %v996, 4294901760
    %v1422 = vsub.f32 %v996, %v1421
    %v1423 = vand.u32 %v1422, 4294901760
    %1424 = vmatmul.f32.gmra.mxu0 %v1423
    %v1425 = vpop.f32.mrf.mxu0
    %v1426 = vadd.f32 %v1323, %v1425
    %v1427 = vand.u32 %v999, 4294901760
    %v1428 = vsub.f32 %v999, %v1427
    %v1429 = vand.u32 %v1428, 4294901760
    %1430 = vmatmul.f32.gmra.mxu0 %v1429
    %v1431 = vpop.f32.mrf.mxu0
    %v1432 = vadd.f32 %v1328, %v1431
    %v1433 = vand.u32 %v1002, 4294901760
    %v1434 = vsub.f32 %v1002, %v1433
    %v1435 = vand.u32 %v1434, 4294901760
    %1436 = vmatmul.f32.gmra.mxu0 %v1435
    %v1437 = vpop.f32.mrf.mxu0
    %v1438 = vadd.f32 %v1333, %v1437
    %v1439 = vand.u32 %v1005, 4294901760
    %v1440 = vsub.f32 %v1005, %v1439
    %v1441 = vand.u32 %v1440, 4294901760
    %1442 = vmatmul.f32.gmra.mxu0 %v1441
    %v1443 = vpop.f32.mrf.mxu0
    %v1444 = vadd.f32 %v1338, %v1443
    %v1445 = vand.u32 %v1008, 4294901760
    %v1446 = vsub.f32 %v1008, %v1445
    %v1447 = vand.u32 %v1446, 4294901760
    %1448 = vmatmul.f32.gmra.mxu0 %v1447
    %v1449 = vpop.f32.mrf.mxu0
    %v1450 = vadd.f32 %v1343, %v1449
    %v1451 = vand.u32 %v1011, 4294901760
    %v1452 = vsub.f32 %v1011, %v1451
    %v1453 = vand.u32 %v1452, 4294901760
    %1454 = vmatmul.f32.gmra.mxu0 %v1453
    %v1455 = vpop.f32.mrf.mxu0
    %v1456 = vadd.f32 %v1348, %v1455
    %v1457 = vand.u32 %v1014, 4294901760
    %v1458 = vsub.f32 %v1014, %v1457
    %v1459 = vand.u32 %v1458, 4294901760
    %1460 = vmatmul.f32.gmra.mxu0 %v1459
    %v1461 = vpop.f32.mrf.mxu0
    %v1462 = vadd.f32 %v1353, %v1461
    %v1463 = vand.u32 %v1017, 4294901760
    %v1464 = vsub.f32 %v1017, %v1463
    %v1465 = vand.u32 %v1464, 4294901760
    %1466 = vmatmul.f32.gmra.mxu0 %v1465
    %v1467 = vpop.f32.mrf.mxu0
    %v1468 = vadd.f32 %v1358, %v1467
    %v1469 = vand.u32 %v1020, 4294901760
    %v1470 = vsub.f32 %v1020, %v1469
    %v1471 = vand.u32 %v1470, 4294901760
    %1472 = vmatmul.f32.gmra.mxu0 %v1471
    %v1473 = vpop.f32.mrf.mxu0
    %v1474 = vadd.f32 %v1363, %v1473
    %v1475 = vand.u32 %v1023, 4294901760
    %v1476 = vsub.f32 %v1023, %v1475
    %v1477 = vand.u32 %v1476, 4294901760
    %1478 = vmatmul.f32.gmra.mxu0 %v1477
    %v1479 = vpop.f32.mrf.mxu0
    %v1480 = vadd.f32 %v1368, %v1479
    %v1481 = vand.u32 %v1026, 4294901760
    %v1482 = vsub.f32 %v1026, %v1481
    %v1483 = vand.u32 %v1482, 4294901760
    %1484 = vmatmul.f32.gmra.mxu0 %v1483
    %v1485 = vpop.f32.mrf.mxu0
    %v1486 = vadd.f32 %v1373, %v1485
    %v1487 = vand.u32 %v1029, 4294901760
    %v1488 = vsub.f32 %v1029, %v1487
    %v1489 = vand.u32 %v1488, 4294901760
    %1490 = vmatmul.f32.gmra.mxu0 %v1489
    %v1491 = vpop.f32.mrf.mxu0
    %v1492 = vadd.f32 %v1378, %v1491
    %v1493 = vand.u32 %v1032, 4294901760
    %v1494 = vsub.f32 %v1032, %v1493
    %v1495 = vand.u32 %v1494, 4294901760
    %1496 = vmatmul.f32.gmra.mxu0 %v1495
    %v1497 = vpop.f32.mrf.mxu0
    %v1498 = vadd.f32 %v1383, %v1497
    %v1499 = vand.u32 %v1035, 4294901760
    %v1500 = vsub.f32 %v1035, %v1499
    %v1501 = vand.u32 %v1500, 4294901760
    %1502 = vmatmul.f32.gmra.mxu0 %v1501
    %v1503 = vpop.f32.mrf.mxu0
    %v1504 = vadd.f32 %v1388, %v1503
    %v1505 = vand.u32 %v1038, 4294901760
    %v1506 = vsub.f32 %v1038, %v1505
    %v1507 = vand.u32 %v1506, 4294901760
    %1508 = vmatmul.f32.gmra.mxu0 %v1507
    %v1509 = vpop.f32.mrf.mxu0
    %v1510 = vadd.f32 %v1393, %v1509
    %1511 = vdwg.mxu0
    %1512 = vmatpush.msra.mxu0 0.0
    %1513 = vmatpush.msra.mxu0 0.0
    %1514 = vmatpush.msra.mxu0 0.0
    %1515 = vmatpush.msra.mxu0 0.0
    %1516 = vmatpush.msra.mxu0 0.0
    %1517 = vmatpush.msra.mxu0 0.0
    %1518 = vmatpush.msra.mxu0 0.0
    %1519 = vmatpush.msra.mxu0 0.0
    %1520 = vmatpush.msra.mxu0 0.0
    %1521 = vmatpush.msra.mxu0 0.0
    %1522 = vmatpush.msra.mxu0 0.0
    %1523 = vmatpush.msra.mxu0 0.0
    %v1524 = vand.u32 %v293, 4294901760
    %v1525 = vsub.f32 %v293, %v1524
    %v1526 = vand.u32 %v1525, 4294901760
    %1527 = vmatpush.msra.mxu0 %v1526
    %v1528 = vand.u32 %v287, 4294901760
    %v1529 = vsub.f32 %v287, %v1528
    %v1530 = vand.u32 %v1529, 4294901760
    %1531 = vmatpush.msra.mxu0 %v1530
    %v1532 = vand.u32 %v281, 4294901760
    %v1533 = vsub.f32 %v281, %v1532
    %v1534 = vand.u32 %v1533, 4294901760
    %1535 = vmatpush.msra.mxu0 %v1534
    %v1536 = vand.u32 %v275, 4294901760
    %v1537 = vsub.f32 %v275, %v1536
    %v1538 = vand.u32 %v1537, 4294901760
    %1539 = vmatpush.msra.mxu0 %v1538
    %v1540 = vand.u32 %v993, 4294901760
    %1541 = vmatmul.f32.gmra.mxu0 %v1540
    %v1542 = vpop.f32.mrf.mxu0
    %v1543 = vadd.f32 %v1420, %v1542
    %v1544 = vand.u32 %v996, 4294901760
    %1545 = vmatmul.f32.gmra.mxu0 %v1544
    %v1546 = vpop.f32.mrf.mxu0
    %v1547 = vadd.f32 %v1426, %v1546
    %v1548 = vand.u32 %v999, 4294901760
    %1549 = vmatmul.f32.gmra.mxu0 %v1548
    %v1550 = vpop.f32.mrf.mxu0
    %v1551 = vadd.f32 %v1432, %v1550
    %v1552 = vand.u32 %v1002, 4294901760
    %1553 = vmatmul.f32.gmra.mxu0 %v1552
    %v1554 = vpop.f32.mrf.mxu0
    %v1555 = vadd.f32 %v1438, %v1554
    %v1556 = vand.u32 %v1005, 4294901760
    %1557 = vmatmul.f32.gmra.mxu0 %v1556
    %v1558 = vpop.f32.mrf.mxu0
    %v1559 = vadd.f32 %v1444, %v1558
    %v1560 = vand.u32 %v1008, 4294901760
    %1561 = vmatmul.f32.gmra.mxu0 %v1560
    %v1562 = vpop.f32.mrf.mxu0
    %v1563 = vadd.f32 %v1450, %v1562
    %v1564 = vand.u32 %v1011, 4294901760
    %1565 = vmatmul.f32.gmra.mxu0 %v1564
    %v1566 = vpop.f32.mrf.mxu0
    %v1567 = vadd.f32 %v1456, %v1566
    %v1568 = vand.u32 %v1014, 4294901760
    %1569 = vmatmul.f32.gmra.mxu0 %v1568
    %v1570 = vpop.f32.mrf.mxu0
    %v1571 = vadd.f32 %v1462, %v1570
    %v1572 = vand.u32 %v1017, 4294901760
    %1573 = vmatmul.f32.gmra.mxu0 %v1572
    %v1574 = vpop.f32.mrf.mxu0
    %v1575 = vadd.f32 %v1468, %v1574
    %v1576 = vand.u32 %v1020, 4294901760
    %1577 = vmatmul.f32.gmra.mxu0 %v1576
    %v1578 = vpop.f32.mrf.mxu0
    %v1579 = vadd.f32 %v1474, %v1578
    %v1580 = vand.u32 %v1023, 4294901760
    %1581 = vmatmul.f32.gmra.mxu0 %v1580
    %v1582 = vpop.f32.mrf.mxu0
    %v1583 = vadd.f32 %v1480, %v1582
    %v1584 = vand.u32 %v1026, 4294901760
    %1585 = vmatmul.f32.gmra.mxu0 %v1584
    %v1586 = vpop.f32.mrf.mxu0
    %v1587 = vadd.f32 %v1486, %v1586
    %v1588 = vand.u32 %v1029, 4294901760
    %1589 = vmatmul.f32.gmra.mxu0 %v1588
    %v1590 = vpop.f32.mrf.mxu0
    %v1591 = vadd.f32 %v1492, %v1590
    %v1592 = vand.u32 %v1032, 4294901760
    %1593 = vmatmul.f32.gmra.mxu0 %v1592
    %v1594 = vpop.f32.mrf.mxu0
    %v1595 = vadd.f32 %v1498, %v1594
    %v1596 = vand.u32 %v1035, 4294901760
    %1597 = vmatmul.f32.gmra.mxu0 %v1596
    %v1598 = vpop.f32.mrf.mxu0
    %v1599 = vadd.f32 %v1504, %v1598
    %v1600 = vand.u32 %v1038, 4294901760
    %1601 = vmatmul.f32.gmra.mxu0 %v1600
    %v1602 = vpop.f32.mrf.mxu0
    %v1603 = vadd.f32 %v1510, %v1602
    %1604 = vdwg.mxu0
    %1605 = vmatpush.msra.mxu0 0.0
    %1606 = vmatpush.msra.mxu0 0.0
    %1607 = vmatpush.msra.mxu0 0.0
    %1608 = vmatpush.msra.mxu0 0.0
    %1609 = vmatpush.msra.mxu0 0.0
    %1610 = vmatpush.msra.mxu0 0.0
    %1611 = vmatpush.msra.mxu0 0.0
    %1612 = vmatpush.msra.mxu0 0.0
    %1613 = vmatpush.msra.mxu0 0.0
    %1614 = vmatpush.msra.mxu0 0.0
    %1615 = vmatpush.msra.mxu0 0.0
    %1616 = vmatpush.msra.mxu0 0.0
    %v1617 = vand.u32 %v293, 4294901760
    %1618 = vmatpush.msra.mxu0 %v1617
    %v1619 = vand.u32 %v287, 4294901760
    %1620 = vmatpush.msra.mxu0 %v1619
    %v1621 = vand.u32 %v281, 4294901760
    %1622 = vmatpush.msra.mxu0 %v1621
    %v1623 = vand.u32 %v275, 4294901760
    %1624 = vmatpush.msra.mxu0 %v1623
    %v1625 = vand.u32 %v993, 4294901760
    %1626 = vmatmul.f32.gmra.mxu0 %v1625
    %v1627 = vpop.f32.mrf.mxu0
    %v1628 = vadd.f32 %v1543, %v1627
    %v1629 = vand.u32 %v996, 4294901760
    %1630 = vmatmul.f32.gmra.mxu0 %v1629
    %v1631 = vpop.f32.mrf.mxu0
    %v1632 = vadd.f32 %v1547, %v1631
    %v1633 = vand.u32 %v999, 4294901760
    %1634 = vmatmul.f32.gmra.mxu0 %v1633
    %v1635 = vpop.f32.mrf.mxu0
    %v1636 = vadd.f32 %v1551, %v1635
    %v1637 = vand.u32 %v1002, 4294901760
    %1638 = vmatmul.f32.gmra.mxu0 %v1637
    %v1639 = vpop.f32.mrf.mxu0
    %v1640 = vadd.f32 %v1555, %v1639
    %v1641 = vand.u32 %v1005, 4294901760
    %1642 = vmatmul.f32.gmra.mxu0 %v1641
    %v1643 = vpop.f32.mrf.mxu0
    %v1644 = vadd.f32 %v1559, %v1643
    %v1645 = vand.u32 %v1008, 4294901760
    %1646 = vmatmul.f32.gmra.mxu0 %v1645
    %v1647 = vpop.f32.mrf.mxu0
    %v1648 = vadd.f32 %v1563, %v1647
    %v1649 = vand.u32 %v1011, 4294901760
    %1650 = vmatmul.f32.gmra.mxu0 %v1649
    %v1651 = vpop.f32.mrf.mxu0
    %v1652 = vadd.f32 %v1567, %v1651
    %v1653 = vand.u32 %v1014, 4294901760
    %1654 = vmatmul.f32.gmra.mxu0 %v1653
    %v1655 = vpop.f32.mrf.mxu0
    %v1656 = vadd.f32 %v1571, %v1655
    %v1657 = vand.u32 %v1017, 4294901760
    %1658 = vmatmul.f32.gmra.mxu0 %v1657
    %v1659 = vpop.f32.mrf.mxu0
    %v1660 = vadd.f32 %v1575, %v1659
    %v1661 = vand.u32 %v1020, 4294901760
    %1662 = vmatmul.f32.gmra.mxu0 %v1661
    %v1663 = vpop.f32.mrf.mxu0
    %v1664 = vadd.f32 %v1579, %v1663
    %v1665 = vand.u32 %v1023, 4294901760
    %1666 = vmatmul.f32.gmra.mxu0 %v1665
    %v1667 = vpop.f32.mrf.mxu0
    %v1668 = vadd.f32 %v1583, %v1667
    %v1669 = vand.u32 %v1026, 4294901760
    %1670 = vmatmul.f32.gmra.mxu0 %v1669
    %v1671 = vpop.f32.mrf.mxu0
    %v1672 = vadd.f32 %v1587, %v1671
    %v1673 = vand.u32 %v1029, 4294901760
    %1674 = vmatmul.f32.gmra.mxu0 %v1673
    %v1675 = vpop.f32.mrf.mxu0
    %v1676 = vadd.f32 %v1591, %v1675
    %v1677 = vand.u32 %v1032, 4294901760
    %1678 = vmatmul.f32.gmra.mxu0 %v1677
    %v1679 = vpop.f32.mrf.mxu0
    %v1680 = vadd.f32 %v1595, %v1679
    %v1681 = vand.u32 %v1035, 4294901760
    %1682 = vmatmul.f32.gmra.mxu0 %v1681
    %v1683 = vpop.f32.mrf.mxu0
    %v1684 = vadd.f32 %v1599, %v1683
    %v1685 = vand.u32 %v1038, 4294901760
    %1686 = vmatmul.f32.gmra.mxu0 %v1685
    %v1687 = vpop.f32.mrf.mxu0
    %v1688 = vadd.f32 %v1603, %v1687
    %1689 = vdwg.mxu0
    %v1690 = vld [vmem:[%s3] sm:$0x3]
    %v1692 = vperm.slane %v1690, 0
    %v1693 = vlaneseq
    %v1694 = vshrl.u32 %v1693, 7
    %1696 = vset.pattern.permute.xlu0 %v1694
    %1697 = vperm.xlu0 %1696, %v1692
    %v1698 = vpop.permute.xlu0 %1697
    %v1699 = vlaneseq
    %v1700 = vshrl.u32 %v1699, 7
    %v1701 = vadd.s32 %v1700, 8
    %1702 = vset.pattern.permute.xlu0 %v1701
    %1703 = vperm.xlu0 %1702, %v1692
    %v1704 = vpop.permute.xlu0 %1703
    %v1705 = vlaneseq
    %v1706 = vshrl.u32 %v1705, 7
    %v1707 = vadd.s32 %v1706, 16
    %1708 = vset.pattern.permute.xlu0 %v1707
    %1709 = vperm.xlu0 %1708, %v1692
    %v1710 = vpop.permute.xlu0 %1709
    %v1711 = vlaneseq
    %v1712 = vshrl.u32 %v1711, 7
    %v1713 = vadd.s32 %v1712, 24
    %1714 = vset.pattern.permute.xlu0 %v1713
    %1715 = vperm.xlu0 %1714, %v1692
    %v1716 = vpop.permute.xlu0 %1715
    %v1717 = vlaneseq
    %v1718 = vshrl.u32 %v1717, 7
    %v1719 = vadd.s32 %v1718, 32
    %1720 = vset.pattern.permute.xlu0 %v1719
    %1721 = vperm.xlu0 %1720, %v1692
    %v1722 = vpop.permute.xlu0 %1721
    %v1723 = vlaneseq
    %v1724 = vshrl.u32 %v1723, 7
    %v1725 = vadd.s32 %v1724, 40
    %1726 = vset.pattern.permute.xlu0 %v1725
    %1727 = vperm.xlu0 %1726, %v1692
    %v1728 = vpop.permute.xlu0 %1727
    %v1729 = vlaneseq
    %v1730 = vshrl.u32 %v1729, 7
    %v1731 = vadd.s32 %v1730, 48
    %1732 = vset.pattern.permute.xlu0 %v1731
    %1733 = vperm.xlu0 %1732, %v1692
    %v1734 = vpop.permute.xlu0 %1733
    %v1735 = vlaneseq
    %v1736 = vshrl.u32 %v1735, 7
    %v1737 = vadd.s32 %v1736, 56
    %1738 = vset.pattern.permute.xlu0 %v1737
    %1739 = vperm.xlu0 %1738, %v1692
    %v1740 = vpop.permute.xlu0 %1739
    %v1741 = vlaneseq
    %v1742 = vshrl.u32 %v1741, 7
    %v1743 = vadd.s32 %v1742, 64
    %1744 = vset.pattern.permute.xlu0 %v1743
    %1745 = vperm.xlu0 %1744, %v1692
    %v1746 = vpop.permute.xlu0 %1745
    %v1747 = vlaneseq
    %v1748 = vshrl.u32 %v1747, 7
    %v1749 = vadd.s32 %v1748, 72
    %1750 = vset.pattern.permute.xlu0 %v1749
    %1751 = vperm.xlu0 %1750, %v1692
    %v1752 = vpop.permute.xlu0 %1751
    %v1753 = vlaneseq
    %v1754 = vshrl.u32 %v1753, 7
    %v1755 = vadd.s32 %v1754, 80
    %1756 = vset.pattern.permute.xlu0 %v1755
    %1757 = vperm.xlu0 %1756, %v1692
    %v1758 = vpop.permute.xlu0 %1757
    %v1759 = vlaneseq
    %v1760 = vshrl.u32 %v1759, 7
    %v1761 = vadd.s32 %v1760, 88
    %1762 = vset.pattern.permute.xlu0 %v1761
    %1763 = vperm.xlu0 %1762, %v1692
    %v1764 = vpop.permute.xlu0 %1763
    %v1765 = vlaneseq
    %v1766 = vshrl.u32 %v1765, 7
    %v1767 = vadd.s32 %v1766, 96
    %1768 = vset.pattern.permute.xlu0 %v1767
    %1769 = vperm.xlu0 %1768, %v1692
    %v1770 = vpop.permute.xlu0 %1769
    %v1771 = vlaneseq
    %v1772 = vshrl.u32 %v1771, 7
    %v1773 = vadd.s32 %v1772, 104
    %1774 = vset.pattern.permute.xlu0 %v1773
    %1775 = vperm.xlu0 %1774, %v1692
    %v1776 = vpop.permute.xlu0 %1775
    %v1777 = vlaneseq
    %v1778 = vshrl.u32 %v1777, 7
    %v1779 = vadd.s32 %v1778, 112
    %1780 = vset.pattern.permute.xlu0 %v1779
    %1781 = vperm.xlu0 %1780, %v1692
    %v1782 = vpop.permute.xlu0 %1781
    %v1783 = vlaneseq
    %v1784 = vshrl.u32 %v1783, 7
    %v1785 = vadd.s32 %v1784, 120
    %1786 = vset.pattern.permute.xlu0 %v1785
    %1787 = vperm.xlu0 %1786, %v1692
    %v1788 = vpop.permute.xlu0 %1787
    %v1789 = vperm.slane %v1690, 1
    %v1790 = vlaneseq
    %v1791 = vshrl.u32 %v1790, 7
    %1793 = vset.pattern.permute.xlu0 %v1791
    %1794 = vperm.xlu0 %1793, %v1789
    %v1795 = vpop.permute.xlu0 %1794
    %v1796 = vlaneseq
    %v1797 = vshrl.u32 %v1796, 7
    %v1798 = vadd.s32 %v1797, 8
    %1799 = vset.pattern.permute.xlu0 %v1798
    %1800 = vperm.xlu0 %1799, %v1789
    %v1801 = vpop.permute.xlu0 %1800
    %v1802 = vlaneseq
    %v1803 = vshrl.u32 %v1802, 7
    %v1804 = vadd.s32 %v1803, 16
    %1805 = vset.pattern.permute.xlu0 %v1804
    %1806 = vperm.xlu0 %1805, %v1789
    %v1807 = vpop.permute.xlu0 %1806
    %v1808 = vlaneseq
    %v1809 = vshrl.u32 %v1808, 7
    %v1810 = vadd.s32 %v1809, 24
    %1811 = vset.pattern.permute.xlu0 %v1810
    %1812 = vperm.xlu0 %1811, %v1789
    %v1813 = vpop.permute.xlu0 %1812
    %v1814 = vlaneseq
    %v1815 = vshrl.u32 %v1814, 7
    %v1816 = vadd.s32 %v1815, 32
    %1817 = vset.pattern.permute.xlu0 %v1816
    %1818 = vperm.xlu0 %1817, %v1789
    %v1819 = vpop.permute.xlu0 %1818
    %v1820 = vlaneseq
    %v1821 = vshrl.u32 %v1820, 7
    %v1822 = vadd.s32 %v1821, 40
    %1823 = vset.pattern.permute.xlu0 %v1822
    %1824 = vperm.xlu0 %1823, %v1789
    %v1825 = vpop.permute.xlu0 %1824
    %v1826 = vlaneseq
    %v1827 = vshrl.u32 %v1826, 7
    %v1828 = vadd.s32 %v1827, 48
    %1829 = vset.pattern.permute.xlu0 %v1828
    %1830 = vperm.xlu0 %1829, %v1789
    %v1831 = vpop.permute.xlu0 %1830
    %v1832 = vlaneseq
    %v1833 = vshrl.u32 %v1832, 7
    %v1834 = vadd.s32 %v1833, 56
    %1835 = vset.pattern.permute.xlu0 %v1834
    %1836 = vperm.xlu0 %1835, %v1789
    %v1837 = vpop.permute.xlu0 %1836
    %v1838 = vlaneseq
    %v1839 = vshrl.u32 %v1838, 7
    %v1840 = vadd.s32 %v1839, 64
    %1841 = vset.pattern.permute.xlu0 %v1840
    %1842 = vperm.xlu0 %1841, %v1789
    %v1843 = vpop.permute.xlu0 %1842
    %v1844 = vlaneseq
    %v1845 = vshrl.u32 %v1844, 7
    %v1846 = vadd.s32 %v1845, 72
    %1847 = vset.pattern.permute.xlu0 %v1846
    %1848 = vperm.xlu0 %1847, %v1789
    %v1849 = vpop.permute.xlu0 %1848
    %v1850 = vlaneseq
    %v1851 = vshrl.u32 %v1850, 7
    %v1852 = vadd.s32 %v1851, 80
    %1853 = vset.pattern.permute.xlu0 %v1852
    %1854 = vperm.xlu0 %1853, %v1789
    %v1855 = vpop.permute.xlu0 %1854
    %v1856 = vlaneseq
    %v1857 = vshrl.u32 %v1856, 7
    %v1858 = vadd.s32 %v1857, 88
    %1859 = vset.pattern.permute.xlu0 %v1858
    %1860 = vperm.xlu0 %1859, %v1789
    %v1861 = vpop.permute.xlu0 %1860
    %v1862 = vlaneseq
    %v1863 = vshrl.u32 %v1862, 7
    %v1864 = vadd.s32 %v1863, 96
    %1865 = vset.pattern.permute.xlu0 %v1864
    %1866 = vperm.xlu0 %1865, %v1789
    %v1867 = vpop.permute.xlu0 %1866
    %v1868 = vlaneseq
    %v1869 = vshrl.u32 %v1868, 7
    %v1870 = vadd.s32 %v1869, 104
    %1871 = vset.pattern.permute.xlu0 %v1870
    %1872 = vperm.xlu0 %1871, %v1789
    %v1873 = vpop.permute.xlu0 %1872
    %v1874 = vlaneseq
    %v1875 = vshrl.u32 %v1874, 7
    %v1876 = vadd.s32 %v1875, 112
    %1877 = vset.pattern.permute.xlu0 %v1876
    %1878 = vperm.xlu0 %1877, %v1789
    %v1879 = vpop.permute.xlu0 %1878
    %v1880 = vlaneseq
    %v1881 = vshrl.u32 %v1880, 7
    %v1882 = vadd.s32 %v1881, 120
    %1883 = vset.pattern.permute.xlu0 %v1882
    %1884 = vperm.xlu0 %1883, %v1789
    %v1885 = vpop.permute.xlu0 %1884
    %v1918 = vadd.f32 %v930, %v1698
    %v1919 = vadd.f32 %v934, %v1704
    %v1920 = vadd.f32 %v938, %v1710
    %v1921 = vadd.f32 %v942, %v1716
    %v1922 = vadd.f32 %v946, %v1722
    %v1923 = vadd.f32 %v950, %v1728
    %v1924 = vadd.f32 %v954, %v1734
    %v1925 = vadd.f32 %v958, %v1740
    %v1926 = vadd.f32 %v962, %v1746
    %v1927 = vadd.f32 %v966, %v1752
    %v1928 = vadd.f32 %v970, %v1758
    %v1929 = vadd.f32 %v974, %v1764
    %v1930 = vadd.f32 %v978, %v1770
    %v1931 = vadd.f32 %v982, %v1776
    %v1932 = vadd.f32 %v986, %v1782
    %v1933 = vadd.f32 %v990, %v1788
    %v1934 = vadd.f32 %v1628, %v1795
    %v1935 = vadd.f32 %v1632, %v1801
    %v1936 = vadd.f32 %v1636, %v1807
    %v1937 = vadd.f32 %v1640, %v1813
    %v1938 = vadd.f32 %v1644, %v1819
    %v1939 = vadd.f32 %v1648, %v1825
    %v1940 = vadd.f32 %v1652, %v1831
    %v1941 = vadd.f32 %v1656, %v1837
    %v1942 = vadd.f32 %v1660, %v1843
    %v1943 = vadd.f32 %v1664, %v1849
    %v1944 = vadd.f32 %v1668, %v1855
    %v1945 = vadd.f32 %v1672, %v1861
    %v1946 = vadd.f32 %v1676, %v1867
    %v1947 = vadd.f32 %v1680, %v1873
    %v1948 = vadd.f32 %v1684, %v1879
    %v1949 = vadd.f32 %v1688, %v1885
    %1982 = vset.pattern.permute.xlu0 0
    %1983 = vperm.xlu0 %1982, %v1918
    %v1984 = vpop.permute.xlu0 %1983
    %1985 = vset.pattern.permute.xlu0 0
    %1986 = vperm.xlu0 %1985, %v1919
    %v1987 = vpop.permute.xlu0 %1986
    %1988 = vset.pattern.permute.xlu0 0
    %1989 = vperm.xlu0 %1988, %v1920
    %v1990 = vpop.permute.xlu0 %1989
    %1991 = vset.pattern.permute.xlu0 0
    %1992 = vperm.xlu0 %1991, %v1921
    %v1993 = vpop.permute.xlu0 %1992
    %1994 = vset.pattern.permute.xlu0 0
    %1995 = vperm.xlu0 %1994, %v1922
    %v1996 = vpop.permute.xlu0 %1995
    %1997 = vset.pattern.permute.xlu0 0
    %1998 = vperm.xlu0 %1997, %v1923
    %v1999 = vpop.permute.xlu0 %1998
    %2000 = vset.pattern.permute.xlu0 0
    %2001 = vperm.xlu0 %2000, %v1924
    %v2002 = vpop.permute.xlu0 %2001
    %2003 = vset.pattern.permute.xlu0 0
    %2004 = vperm.xlu0 %2003, %v1925
    %v2005 = vpop.permute.xlu0 %2004
    %2006 = vset.pattern.permute.xlu0 0
    %2007 = vperm.xlu0 %2006, %v1926
    %v2008 = vpop.permute.xlu0 %2007
    %2009 = vset.pattern.permute.xlu0 0
    %2010 = vperm.xlu0 %2009, %v1927
    %v2011 = vpop.permute.xlu0 %2010
    %2012 = vset.pattern.permute.xlu0 0
    %2013 = vperm.xlu0 %2012, %v1928
    %v2014 = vpop.permute.xlu0 %2013
    %2015 = vset.pattern.permute.xlu0 0
    %2016 = vperm.xlu0 %2015, %v1929
    %v2017 = vpop.permute.xlu0 %2016
    %2018 = vset.pattern.permute.xlu0 0
    %2019 = vperm.xlu0 %2018, %v1930
    %v2020 = vpop.permute.xlu0 %2019
    %2021 = vset.pattern.permute.xlu0 0
    %2022 = vperm.xlu0 %2021, %v1931
    %v2023 = vpop.permute.xlu0 %2022
    %2024 = vset.pattern.permute.xlu0 0
    %2025 = vperm.xlu0 %2024, %v1932
    %v2026 = vpop.permute.xlu0 %2025
    %2027 = vset.pattern.permute.xlu0 0
    %2028 = vperm.xlu0 %2027, %v1933
    %v2029 = vpop.permute.xlu0 %2028
    %2030 = vset.pattern.permute.xlu0 0
    %2031 = vperm.xlu0 %2030, %v1934
    %v2032 = vpop.permute.xlu0 %2031
    %2033 = vset.pattern.permute.xlu0 0
    %2034 = vperm.xlu0 %2033, %v1935
    %v2035 = vpop.permute.xlu0 %2034
    %2036 = vset.pattern.permute.xlu0 0
    %2037 = vperm.xlu0 %2036, %v1936
    %v2038 = vpop.permute.xlu0 %2037
    %2039 = vset.pattern.permute.xlu0 0
    %2040 = vperm.xlu0 %2039, %v1937
    %v2041 = vpop.permute.xlu0 %2040
    %2042 = vset.pattern.permute.xlu0 0
    %2043 = vperm.xlu0 %2042, %v1938
    %v2044 = vpop.permute.xlu0 %2043
    %2045 = vset.pattern.permute.xlu0 0
    %2046 = vperm.xlu0 %2045, %v1939
    %v2047 = vpop.permute.xlu0 %2046
    %2048 = vset.pattern.permute.xlu0 0
    %2049 = vperm.xlu0 %2048, %v1940
    %v2050 = vpop.permute.xlu0 %2049
    %2051 = vset.pattern.permute.xlu0 0
    %2052 = vperm.xlu0 %2051, %v1941
    %v2053 = vpop.permute.xlu0 %2052
    %2054 = vset.pattern.permute.xlu0 0
    %2055 = vperm.xlu0 %2054, %v1942
    %v2056 = vpop.permute.xlu0 %2055
    %2057 = vset.pattern.permute.xlu0 0
    %2058 = vperm.xlu0 %2057, %v1943
    %v2059 = vpop.permute.xlu0 %2058
    %2060 = vset.pattern.permute.xlu0 0
    %2061 = vperm.xlu0 %2060, %v1944
    %v2062 = vpop.permute.xlu0 %2061
    %2063 = vset.pattern.permute.xlu0 0
    %2064 = vperm.xlu0 %2063, %v1945
    %v2065 = vpop.permute.xlu0 %2064
    %2066 = vset.pattern.permute.xlu0 0
    %2067 = vperm.xlu0 %2066, %v1946
    %v2068 = vpop.permute.xlu0 %2067
    %2069 = vset.pattern.permute.xlu0 0
    %2070 = vperm.xlu0 %2069, %v1947
    %v2071 = vpop.permute.xlu0 %2070
    %2072 = vset.pattern.permute.xlu0 0
    %2073 = vperm.xlu0 %2072, %v1948
    %v2074 = vpop.permute.xlu0 %2073
    %2075 = vset.pattern.permute.xlu0 0
    %2076 = vperm.xlu0 %2075, %v1949
    %v2077 = vpop.permute.xlu0 %2076
    %v2078 = vlaneseq
    %v2079 = vand.u32 %v2078, 127
    %v2080 = vperm.slane %v1984, %v2079
    %v2081 = vadd.s32 %v2079, 4294967288
    %v2082 = vperm.slane %v1987, %v2081
    %vm2083 = vcmask 130112
    %v2084 = vsel %vm2083, %v2082, %v2080
    %v2085 = vadd.s32 %v2079, 4294967280
    %v2086 = vperm.slane %v1990, %v2085
    %vm2087 = vcmask 195712
    %v2088 = vsel %vm2087, %v2086, %v2084
    %v2089 = vadd.s32 %v2079, 4294967272
    %v2090 = vperm.slane %v1993, %v2089
    %vm2091 = vcmask 261312
    %v2092 = vsel %vm2091, %v2090, %v2088
    %v2093 = vadd.s32 %v2079, 4294967264
    %v2094 = vperm.slane %v1996, %v2093
    %vm2095 = vcmask 326912
    %v2096 = vsel %vm2095, %v2094, %v2092
    %v2097 = vadd.s32 %v2079, 4294967256
    %v2098 = vperm.slane %v1999, %v2097
    %vm2099 = vcmask 392512
    %v2100 = vsel %vm2099, %v2098, %v2096
    %v2101 = vadd.s32 %v2079, 4294967248
    %v2102 = vperm.slane %v2002, %v2101
    %vm2103 = vcmask 458112
    %v2104 = vsel %vm2103, %v2102, %v2100
    %v2105 = vadd.s32 %v2079, 4294967240
    %v2106 = vperm.slane %v2005, %v2105
    %vm2107 = vcmask 523712
    %v2108 = vsel %vm2107, %v2106, %v2104
    %v2109 = vadd.s32 %v2079, 4294967232
    %v2110 = vperm.slane %v2008, %v2109
    %vm2111 = vcmask 589312
    %v2112 = vsel %vm2111, %v2110, %v2108
    %v2113 = vadd.s32 %v2079, 4294967224
    %v2114 = vperm.slane %v2011, %v2113
    %vm2115 = vcmask 654912
    %v2116 = vsel %vm2115, %v2114, %v2112
    %v2117 = vadd.s32 %v2079, 4294967216
    %v2118 = vperm.slane %v2014, %v2117
    %vm2119 = vcmask 720512
    %v2120 = vsel %vm2119, %v2118, %v2116
    %v2121 = vadd.s32 %v2079, 4294967208
    %v2122 = vperm.slane %v2017, %v2121
    %vm2123 = vcmask 786112
    %v2124 = vsel %vm2123, %v2122, %v2120
    %v2125 = vadd.s32 %v2079, 4294967200
    %v2126 = vperm.slane %v2020, %v2125
    %vm2127 = vcmask 851712
    %v2128 = vsel %vm2127, %v2126, %v2124
    %v2129 = vadd.s32 %v2079, 4294967192
    %v2130 = vperm.slane %v2023, %v2129
    %vm2131 = vcmask 917312
    %v2132 = vsel %vm2131, %v2130, %v2128
    %v2133 = vadd.s32 %v2079, 4294967184
    %v2134 = vperm.slane %v2026, %v2133
    %vm2135 = vcmask 982912
    %v2136 = vsel %vm2135, %v2134, %v2132
    %v2137 = vadd.s32 %v2079, 4294967176
    %v2138 = vperm.slane %v2029, %v2137
    %vm2139 = vcmask 1048512
    %v2140 = vsel %vm2139, %v2138, %v2136
    %v2141 = vperm.slane %v2032, %v2079
    %v2142 = vperm.slane %v2035, %v2081
    %v2143 = vsel %vm2083, %v2142, %v2141
    %v2144 = vperm.slane %v2038, %v2085
    %v2145 = vsel %vm2087, %v2144, %v2143
    %v2146 = vperm.slane %v2041, %v2089
    %v2147 = vsel %vm2091, %v2146, %v2145
    %v2148 = vperm.slane %v2044, %v2093
    %v2149 = vsel %vm2095, %v2148, %v2147
    %v2150 = vperm.slane %v2047, %v2097
    %v2151 = vsel %vm2099, %v2150, %v2149
    %v2152 = vperm.slane %v2050, %v2101
    %v2153 = vsel %vm2103, %v2152, %v2151
    %v2154 = vperm.slane %v2053, %v2105
    %v2155 = vsel %vm2107, %v2154, %v2153
    %v2156 = vperm.slane %v2056, %v2109
    %v2157 = vsel %vm2111, %v2156, %v2155
    %v2158 = vperm.slane %v2059, %v2113
    %v2159 = vsel %vm2115, %v2158, %v2157
    %v2160 = vperm.slane %v2062, %v2117
    %v2161 = vsel %vm2119, %v2160, %v2159
    %v2162 = vperm.slane %v2065, %v2121
    %v2163 = vsel %vm2123, %v2162, %v2161
    %v2164 = vperm.slane %v2068, %v2125
    %v2165 = vsel %vm2127, %v2164, %v2163
    %v2166 = vperm.slane %v2071, %v2129
    %v2167 = vsel %vm2131, %v2166, %v2165
    %v2168 = vperm.slane %v2074, %v2133
    %v2169 = vsel %vm2135, %v2168, %v2167
    %v2170 = vperm.slane %v2077, %v2137
    %v2171 = vsel %vm2139, %v2170, %v2169
    %vm2172 = vcmask 1041409
    %v2173 = vsel %vm2172, %v2171, %v2140
    %vm2175 = vcmask 1041408
    %v2176 = vsel %vm2175, %v2173, -inf
    %2177 = vmax.xlane.f32.xlu0 %v2176
    %v2178 = vpop.xlane.xlu0 %2177
    %v2180 = vperm.slane %v2178, 0
    %v2181 = vperm.slane %v2178, 1
    %v2184 = vsub.f32 %v1918, %v2180
    %v2185 = vsub.f32 %v1919, %v2180
    %v2186 = vsub.f32 %v1920, %v2180
    %v2187 = vsub.f32 %v1921, %v2180
    %v2188 = vsub.f32 %v1922, %v2180
    %v2189 = vsub.f32 %v1923, %v2180
    %v2190 = vsub.f32 %v1924, %v2180
    %v2191 = vsub.f32 %v1925, %v2180
    %v2192 = vsub.f32 %v1926, %v2180
    %v2193 = vsub.f32 %v1927, %v2180
    %v2194 = vsub.f32 %v1928, %v2180
    %v2195 = vsub.f32 %v1929, %v2180
    %v2196 = vsub.f32 %v1930, %v2180
    %v2197 = vsub.f32 %v1931, %v2180
    %v2198 = vsub.f32 %v1932, %v2180
    %v2199 = vsub.f32 %v1933, %v2180
    %v2200 = vsub.f32 %v1934, %v2181
    %v2201 = vsub.f32 %v1935, %v2181
    %v2202 = vsub.f32 %v1936, %v2181
    %v2203 = vsub.f32 %v1937, %v2181
    %v2204 = vsub.f32 %v1938, %v2181
    %v2205 = vsub.f32 %v1939, %v2181
    %v2206 = vsub.f32 %v1940, %v2181
    %v2207 = vsub.f32 %v1941, %v2181
    %v2208 = vsub.f32 %v1942, %v2181
    %v2209 = vsub.f32 %v1943, %v2181
    %v2210 = vsub.f32 %v1944, %v2181
    %v2211 = vsub.f32 %v1945, %v2181
    %v2212 = vsub.f32 %v1946, %v2181
    %v2213 = vsub.f32 %v1947, %v2181
    %v2214 = vsub.f32 %v1948, %v2181
    %v2215 = vsub.f32 %v1949, %v2181
    %v2216 = vmul.f32 %v2184, 1.442695
    %v2217 = vpow.pop %v2216
    %v2218 = vmul.f32 %v2185, 1.442695
    %v2219 = vpow.pop %v2218
    %v2220 = vmul.f32 %v2186, 1.442695
    %v2221 = vpow.pop %v2220
    %v2222 = vmul.f32 %v2187, 1.442695
    %v2223 = vpow.pop %v2222
    %v2224 = vmul.f32 %v2188, 1.442695
    %v2225 = vpow.pop %v2224
    %v2226 = vmul.f32 %v2189, 1.442695
    %v2227 = vpow.pop %v2226
    %v2228 = vmul.f32 %v2190, 1.442695
    %v2229 = vpow.pop %v2228
    %v2230 = vmul.f32 %v2191, 1.442695
    %v2231 = vpow.pop %v2230
    %v2232 = vmul.f32 %v2192, 1.442695
    %v2233 = vpow.pop %v2232
    %v2234 = vmul.f32 %v2193, 1.442695
    %v2235 = vpow.pop %v2234
    %v2236 = vmul.f32 %v2194, 1.442695
    %v2237 = vpow.pop %v2236
    %v2238 = vmul.f32 %v2195, 1.442695
    %v2239 = vpow.pop %v2238
    %v2240 = vmul.f32 %v2196, 1.442695
    %v2241 = vpow.pop %v2240
    %v2242 = vmul.f32 %v2197, 1.442695
    %v2243 = vpow.pop %v2242
    %v2244 = vmul.f32 %v2198, 1.442695
    %v2245 = vpow.pop %v2244
    %v2246 = vmul.f32 %v2199, 1.442695
    %v2247 = vpow.pop %v2246
    %v2248 = vmul.f32 %v2200, 1.442695
    %v2249 = vpow.pop %v2248
    %v2250 = vmul.f32 %v2201, 1.442695
    %v2251 = vpow.pop %v2250
    %v2252 = vmul.f32 %v2202, 1.442695
    %v2253 = vpow.pop %v2252
    %v2254 = vmul.f32 %v2203, 1.442695
    %v2255 = vpow.pop %v2254
    %v2256 = vmul.f32 %v2204, 1.442695
    %v2257 = vpow.pop %v2256
    %v2258 = vmul.f32 %v2205, 1.442695
    %v2259 = vpow.pop %v2258
    %v2260 = vmul.f32 %v2206, 1.442695
    %v2261 = vpow.pop %v2260
    %v2262 = vmul.f32 %v2207, 1.442695
    %v2263 = vpow.pop %v2262
    %v2264 = vmul.f32 %v2208, 1.442695
    %v2265 = vpow.pop %v2264
    %v2266 = vmul.f32 %v2209, 1.442695
    %v2267 = vpow.pop %v2266
    %v2268 = vmul.f32 %v2210, 1.442695
    %v2269 = vpow.pop %v2268
    %v2270 = vmul.f32 %v2211, 1.442695
    %v2271 = vpow.pop %v2270
    %v2272 = vmul.f32 %v2212, 1.442695
    %v2273 = vpow.pop %v2272
    %v2274 = vmul.f32 %v2213, 1.442695
    %v2275 = vpow.pop %v2274
    %v2276 = vmul.f32 %v2214, 1.442695
    %v2277 = vpow.pop %v2276
    %v2278 = vmul.f32 %v2215, 1.442695
    %v2279 = vpow.pop %v2278
    %2312 = vset.pattern.permute.xlu0 0
    %2313 = vperm.xlu0 %2312, %v2217
    %v2314 = vpop.permute.xlu0 %2313
    %2315 = vset.pattern.permute.xlu0 0
    %2316 = vperm.xlu0 %2315, %v2219
    %v2317 = vpop.permute.xlu0 %2316
    %2318 = vset.pattern.permute.xlu0 0
    %2319 = vperm.xlu0 %2318, %v2221
    %v2320 = vpop.permute.xlu0 %2319
    %2321 = vset.pattern.permute.xlu0 0
    %2322 = vperm.xlu0 %2321, %v2223
    %v2323 = vpop.permute.xlu0 %2322
    %2324 = vset.pattern.permute.xlu0 0
    %2325 = vperm.xlu0 %2324, %v2225
    %v2326 = vpop.permute.xlu0 %2325
    %2327 = vset.pattern.permute.xlu0 0
    %2328 = vperm.xlu0 %2327, %v2227
    %v2329 = vpop.permute.xlu0 %2328
    %2330 = vset.pattern.permute.xlu0 0
    %2331 = vperm.xlu0 %2330, %v2229
    %v2332 = vpop.permute.xlu0 %2331
    %2333 = vset.pattern.permute.xlu0 0
    %2334 = vperm.xlu0 %2333, %v2231
    %v2335 = vpop.permute.xlu0 %2334
    %2336 = vset.pattern.permute.xlu0 0
    %2337 = vperm.xlu0 %2336, %v2233
    %v2338 = vpop.permute.xlu0 %2337
    %2339 = vset.pattern.permute.xlu0 0
    %2340 = vperm.xlu0 %2339, %v2235
    %v2341 = vpop.permute.xlu0 %2340
    %2342 = vset.pattern.permute.xlu0 0
    %2343 = vperm.xlu0 %2342, %v2237
    %v2344 = vpop.permute.xlu0 %2343
    %2345 = vset.pattern.permute.xlu0 0
    %2346 = vperm.xlu0 %2345, %v2239
    %v2347 = vpop.permute.xlu0 %2346
    %2348 = vset.pattern.permute.xlu0 0
    %2349 = vperm.xlu0 %2348, %v2241
    %v2350 = vpop.permute.xlu0 %2349
    %2351 = vset.pattern.permute.xlu0 0
    %2352 = vperm.xlu0 %2351, %v2243
    %v2353 = vpop.permute.xlu0 %2352
    %2354 = vset.pattern.permute.xlu0 0
    %2355 = vperm.xlu0 %2354, %v2245
    %v2356 = vpop.permute.xlu0 %2355
    %2357 = vset.pattern.permute.xlu0 0
    %2358 = vperm.xlu0 %2357, %v2247
    %v2359 = vpop.permute.xlu0 %2358
    %2360 = vset.pattern.permute.xlu0 0
    %2361 = vperm.xlu0 %2360, %v2249
    %v2362 = vpop.permute.xlu0 %2361
    %2363 = vset.pattern.permute.xlu0 0
    %2364 = vperm.xlu0 %2363, %v2251
    %v2365 = vpop.permute.xlu0 %2364
    %2366 = vset.pattern.permute.xlu0 0
    %2367 = vperm.xlu0 %2366, %v2253
    %v2368 = vpop.permute.xlu0 %2367
    %2369 = vset.pattern.permute.xlu0 0
    %2370 = vperm.xlu0 %2369, %v2255
    %v2371 = vpop.permute.xlu0 %2370
    %2372 = vset.pattern.permute.xlu0 0
    %2373 = vperm.xlu0 %2372, %v2257
    %v2374 = vpop.permute.xlu0 %2373
    %2375 = vset.pattern.permute.xlu0 0
    %2376 = vperm.xlu0 %2375, %v2259
    %v2377 = vpop.permute.xlu0 %2376
    %2378 = vset.pattern.permute.xlu0 0
    %2379 = vperm.xlu0 %2378, %v2261
    %v2380 = vpop.permute.xlu0 %2379
    %2381 = vset.pattern.permute.xlu0 0
    %2382 = vperm.xlu0 %2381, %v2263
    %v2383 = vpop.permute.xlu0 %2382
    %2384 = vset.pattern.permute.xlu0 0
    %2385 = vperm.xlu0 %2384, %v2265
    %v2386 = vpop.permute.xlu0 %2385
    %2387 = vset.pattern.permute.xlu0 0
    %2388 = vperm.xlu0 %2387, %v2267
    %v2389 = vpop.permute.xlu0 %2388
    %2390 = vset.pattern.permute.xlu0 0
    %2391 = vperm.xlu0 %2390, %v2269
    %v2392 = vpop.permute.xlu0 %2391
    %2393 = vset.pattern.permute.xlu0 0
    %2394 = vperm.xlu0 %2393, %v2271
    %v2395 = vpop.permute.xlu0 %2394
    %2396 = vset.pattern.permute.xlu0 0
    %2397 = vperm.xlu0 %2396, %v2273
    %v2398 = vpop.permute.xlu0 %2397
    %2399 = vset.pattern.permute.xlu0 0
    %2400 = vperm.xlu0 %2399, %v2275
    %v2401 = vpop.permute.xlu0 %2400
    %2402 = vset.pattern.permute.xlu0 0
    %2403 = vperm.xlu0 %2402, %v2277
    %v2404 = vpop.permute.xlu0 %2403
    %2405 = vset.pattern.permute.xlu0 0
    %2406 = vperm.xlu0 %2405, %v2279
    %v2407 = vpop.permute.xlu0 %2406
    %v2408 = vperm.slane %v2314, %v2079
    %v2409 = vperm.slane %v2317, %v2081
    %v2410 = vsel %vm2083, %v2409, %v2408
    %v2411 = vperm.slane %v2320, %v2085
    %v2412 = vsel %vm2087, %v2411, %v2410
    %v2413 = vperm.slane %v2323, %v2089
    %v2414 = vsel %vm2091, %v2413, %v2412
    %v2415 = vperm.slane %v2326, %v2093
    %v2416 = vsel %vm2095, %v2415, %v2414
    %v2417 = vperm.slane %v2329, %v2097
    %v2418 = vsel %vm2099, %v2417, %v2416
    %v2419 = vperm.slane %v2332, %v2101
    %v2420 = vsel %vm2103, %v2419, %v2418
    %v2421 = vperm.slane %v2335, %v2105
    %v2422 = vsel %vm2107, %v2421, %v2420
    %v2423 = vperm.slane %v2338, %v2109
    %v2424 = vsel %vm2111, %v2423, %v2422
    %v2425 = vperm.slane %v2341, %v2113
    %v2426 = vsel %vm2115, %v2425, %v2424
    %v2427 = vperm.slane %v2344, %v2117
    %v2428 = vsel %vm2119, %v2427, %v2426
    %v2429 = vperm.slane %v2347, %v2121
    %v2430 = vsel %vm2123, %v2429, %v2428
    %v2431 = vperm.slane %v2350, %v2125
    %v2432 = vsel %vm2127, %v2431, %v2430
    %v2433 = vperm.slane %v2353, %v2129
    %v2434 = vsel %vm2131, %v2433, %v2432
    %v2435 = vperm.slane %v2356, %v2133
    %v2436 = vsel %vm2135, %v2435, %v2434
    %v2437 = vperm.slane %v2359, %v2137
    %v2438 = vsel %vm2139, %v2437, %v2436
    %v2439 = vperm.slane %v2362, %v2079
    %v2440 = vperm.slane %v2365, %v2081
    %v2441 = vsel %vm2083, %v2440, %v2439
    %v2442 = vperm.slane %v2368, %v2085
    %v2443 = vsel %vm2087, %v2442, %v2441
    %v2444 = vperm.slane %v2371, %v2089
    %v2445 = vsel %vm2091, %v2444, %v2443
    %v2446 = vperm.slane %v2374, %v2093
    %v2447 = vsel %vm2095, %v2446, %v2445
    %v2448 = vperm.slane %v2377, %v2097
    %v2449 = vsel %vm2099, %v2448, %v2447
    %v2450 = vperm.slane %v2380, %v2101
    %v2451 = vsel %vm2103, %v2450, %v2449
    %v2452 = vperm.slane %v2383, %v2105
    %v2453 = vsel %vm2107, %v2452, %v2451
    %v2454 = vperm.slane %v2386, %v2109
    %v2455 = vsel %vm2111, %v2454, %v2453
    %v2456 = vperm.slane %v2389, %v2113
    %v2457 = vsel %vm2115, %v2456, %v2455
    %v2458 = vperm.slane %v2392, %v2117
    %v2459 = vsel %vm2119, %v2458, %v2457
    %v2460 = vperm.slane %v2395, %v2121
    %v2461 = vsel %vm2123, %v2460, %v2459
    %v2462 = vperm.slane %v2398, %v2125
    %v2463 = vsel %vm2127, %v2462, %v2461
    %v2464 = vperm.slane %v2401, %v2129
    %v2465 = vsel %vm2131, %v2464, %v2463
    %v2466 = vperm.slane %v2404, %v2133
    %v2467 = vsel %vm2135, %v2466, %v2465
    %v2468 = vperm.slane %v2407, %v2137
    %v2469 = vsel %vm2139, %v2468, %v2467
    %v2470 = vsel %vm2172, %v2469, %v2438
    %v2472 = vsel %vm2175, %v2470, 0.0
    %2473 = vadd.xlane.f32.xlu0 %v2472
    %v2474 = vpop.xlane.xlu0 %2473
    %v2476 = vperm.slane %v2474, 0
    %v2477 = vperm.slane %v2474, 1
    %v2480 = vrcp.pop %v2476
    %v2481 = vmul.f32 %v2476, %v2480
    %v2482 = vsub.f32 1.0, %v2481
    %v2483 = vmul.f32 %v2480, %v2482
    %v2484 = vadd.f32 %v2480, %v2483
    %vm2485 = vweird.f32 %v2476
    %vm2486 = vweird.f32 %v2480
    %vm2487 = vmor %vm2485, %vm2486
    %v2488 = vsel %vm2487, %v2480, %v2484
    %v2489 = vand.u32 2147483647, %v2476
    %vm2490 = vcmp.eq.f32.partialorder %v2489, 8.507059e+37
    %v2491 = vand.u32 %v2476, 2147483648
    %v2492 = vor.u32 1.1754944e-38, %v2491
    %v2493 = vsel %vm2490, %v2492, %v2488
    %v2494 = vmul.f32 %v2217, %v2493
    %v2495 = vmul.f32 %v2219, %v2493
    %v2496 = vmul.f32 %v2221, %v2493
    %v2497 = vmul.f32 %v2223, %v2493
    %v2498 = vmul.f32 %v2225, %v2493
    %v2499 = vmul.f32 %v2227, %v2493
    %v2500 = vmul.f32 %v2229, %v2493
    %v2501 = vmul.f32 %v2231, %v2493
    %v2502 = vmul.f32 %v2233, %v2493
    %v2503 = vmul.f32 %v2235, %v2493
    %v2504 = vmul.f32 %v2237, %v2493
    %v2505 = vmul.f32 %v2239, %v2493
    %v2506 = vmul.f32 %v2241, %v2493
    %v2507 = vmul.f32 %v2243, %v2493
    %v2508 = vmul.f32 %v2245, %v2493
    %v2509 = vmul.f32 %v2247, %v2493
    %v2510 = vrcp.pop %v2477
    %v2511 = vmul.f32 %v2477, %v2510
    %v2512 = vsub.f32 1.0, %v2511
    %v2513 = vmul.f32 %v2510, %v2512
    %v2514 = vadd.f32 %v2510, %v2513
    %vm2515 = vweird.f32 %v2477
    %vm2516 = vweird.f32 %v2510
    %vm2517 = vmor %vm2515, %vm2516
    %v2518 = vsel %vm2517, %v2510, %v2514
    %v2519 = vand.u32 2147483647, %v2477
    %vm2520 = vcmp.eq.f32.partialorder %v2519, 8.507059e+37
    %v2521 = vand.u32 %v2477, 2147483648
    %v2522 = vor.u32 1.1754944e-38, %v2521
    %v2523 = vsel %vm2520, %v2522, %v2518
    %v2524 = vmul.f32 %v2249, %v2523
    %v2525 = vmul.f32 %v2251, %v2523
    %v2526 = vmul.f32 %v2253, %v2523
    %v2527 = vmul.f32 %v2255, %v2523
    %v2528 = vmul.f32 %v2257, %v2523
    %v2529 = vmul.f32 %v2259, %v2523
    %v2530 = vmul.f32 %v2261, %v2523
    %v2531 = vmul.f32 %v2263, %v2523
    %v2532 = vmul.f32 %v2265, %v2523
    %v2533 = vmul.f32 %v2267, %v2523
    %v2534 = vmul.f32 %v2269, %v2523
    %v2535 = vmul.f32 %v2271, %v2523
    %v2536 = vmul.f32 %v2273, %v2523
    %v2537 = vmul.f32 %v2275, %v2523
    %v2538 = vmul.f32 %v2277, %v2523
    %v2539 = vmul.f32 %v2279, %v2523
    %2572 = vset.pattern.permute.xlu0 0
    %2573 = vperm.xlu0 %2572, %v2494
    %v2574 = vpop.permute.xlu0 %2573
    %2575 = vset.pattern.permute.xlu0 0
    %2576 = vperm.xlu0 %2575, %v2495
    %v2577 = vpop.permute.xlu0 %2576
    %2578 = vset.pattern.permute.xlu0 0
    %2579 = vperm.xlu0 %2578, %v2496
    %v2580 = vpop.permute.xlu0 %2579
    %2581 = vset.pattern.permute.xlu0 0
    %2582 = vperm.xlu0 %2581, %v2497
    %v2583 = vpop.permute.xlu0 %2582
    %2584 = vset.pattern.permute.xlu0 0
    %2585 = vperm.xlu0 %2584, %v2498
    %v2586 = vpop.permute.xlu0 %2585
    %2587 = vset.pattern.permute.xlu0 0
    %2588 = vperm.xlu0 %2587, %v2499
    %v2589 = vpop.permute.xlu0 %2588
    %2590 = vset.pattern.permute.xlu0 0
    %2591 = vperm.xlu0 %2590, %v2500
    %v2592 = vpop.permute.xlu0 %2591
    %2593 = vset.pattern.permute.xlu0 0
    %2594 = vperm.xlu0 %2593, %v2501
    %v2595 = vpop.permute.xlu0 %2594
    %2596 = vset.pattern.permute.xlu0 0
    %2597 = vperm.xlu0 %2596, %v2502
    %v2598 = vpop.permute.xlu0 %2597
    %2599 = vset.pattern.permute.xlu0 0
    %2600 = vperm.xlu0 %2599, %v2503
    %v2601 = vpop.permute.xlu0 %2600
    %2602 = vset.pattern.permute.xlu0 0
    %2603 = vperm.xlu0 %2602, %v2504
    %v2604 = vpop.permute.xlu0 %2603
    %2605 = vset.pattern.permute.xlu0 0
    %2606 = vperm.xlu0 %2605, %v2505
    %v2607 = vpop.permute.xlu0 %2606
    %2608 = vset.pattern.permute.xlu0 0
    %2609 = vperm.xlu0 %2608, %v2506
    %v2610 = vpop.permute.xlu0 %2609
    %2611 = vset.pattern.permute.xlu0 0
    %2612 = vperm.xlu0 %2611, %v2507
    %v2613 = vpop.permute.xlu0 %2612
    %2614 = vset.pattern.permute.xlu0 0
    %2615 = vperm.xlu0 %2614, %v2508
    %v2616 = vpop.permute.xlu0 %2615
    %2617 = vset.pattern.permute.xlu0 0
    %2618 = vperm.xlu0 %2617, %v2509
    %v2619 = vpop.permute.xlu0 %2618
    %2620 = vset.pattern.permute.xlu0 0
    %2621 = vperm.xlu0 %2620, %v2524
    %v2622 = vpop.permute.xlu0 %2621
    %2623 = vset.pattern.permute.xlu0 0
    %2624 = vperm.xlu0 %2623, %v2525
    %v2625 = vpop.permute.xlu0 %2624
    %2626 = vset.pattern.permute.xlu0 0
    %2627 = vperm.xlu0 %2626, %v2526
    %v2628 = vpop.permute.xlu0 %2627
    %2629 = vset.pattern.permute.xlu0 0
    %2630 = vperm.xlu0 %2629, %v2527
    %v2631 = vpop.permute.xlu0 %2630
    %2632 = vset.pattern.permute.xlu0 0
    %2633 = vperm.xlu0 %2632, %v2528
    %v2634 = vpop.permute.xlu0 %2633
    %2635 = vset.pattern.permute.xlu0 0
    %2636 = vperm.xlu0 %2635, %v2529
    %v2637 = vpop.permute.xlu0 %2636
    %2638 = vset.pattern.permute.xlu0 0
    %2639 = vperm.xlu0 %2638, %v2530
    %v2640 = vpop.permute.xlu0 %2639
    %2641 = vset.pattern.permute.xlu0 0
    %2642 = vperm.xlu0 %2641, %v2531
    %v2643 = vpop.permute.xlu0 %2642
    %2644 = vset.pattern.permute.xlu0 0
    %2645 = vperm.xlu0 %2644, %v2532
    %v2646 = vpop.permute.xlu0 %2645
    %2647 = vset.pattern.permute.xlu0 0
    %2648 = vperm.xlu0 %2647, %v2533
    %v2649 = vpop.permute.xlu0 %2648
    %2650 = vset.pattern.permute.xlu0 0
    %2651 = vperm.xlu0 %2650, %v2534
    %v2652 = vpop.permute.xlu0 %2651
    %2653 = vset.pattern.permute.xlu0 0
    %2654 = vperm.xlu0 %2653, %v2535
    %v2655 = vpop.permute.xlu0 %2654
    %2656 = vset.pattern.permute.xlu0 0
    %2657 = vperm.xlu0 %2656, %v2536
    %v2658 = vpop.permute.xlu0 %2657
    %2659 = vset.pattern.permute.xlu0 0
    %2660 = vperm.xlu0 %2659, %v2537
    %v2661 = vpop.permute.xlu0 %2660
    %2662 = vset.pattern.permute.xlu0 0
    %2663 = vperm.xlu0 %2662, %v2538
    %v2664 = vpop.permute.xlu0 %2663
    %2665 = vset.pattern.permute.xlu0 0
    %2666 = vperm.xlu0 %2665, %v2539
    %v2667 = vpop.permute.xlu0 %2666
    %v2668 = vperm.slane %v2574, %v2079
    %v2669 = vperm.slane %v2577, %v2081
    %v2670 = vsel %vm2083, %v2669, %v2668
    %v2671 = vperm.slane %v2580, %v2085
    %v2672 = vsel %vm2087, %v2671, %v2670
    %v2673 = vperm.slane %v2583, %v2089
    %v2674 = vsel %vm2091, %v2673, %v2672
    %v2675 = vperm.slane %v2586, %v2093
    %v2676 = vsel %vm2095, %v2675, %v2674
    %v2677 = vperm.slane %v2589, %v2097
    %v2678 = vsel %vm2099, %v2677, %v2676
    %v2679 = vperm.slane %v2592, %v2101
    %v2680 = vsel %vm2103, %v2679, %v2678
    %v2681 = vperm.slane %v2595, %v2105
    %v2682 = vsel %vm2107, %v2681, %v2680
    %v2683 = vperm.slane %v2598, %v2109
    %v2684 = vsel %vm2111, %v2683, %v2682
    %v2685 = vperm.slane %v2601, %v2113
    %v2686 = vsel %vm2115, %v2685, %v2684
    %v2687 = vperm.slane %v2604, %v2117
    %v2688 = vsel %vm2119, %v2687, %v2686
    %v2689 = vperm.slane %v2607, %v2121
    %v2690 = vsel %vm2123, %v2689, %v2688
    %v2691 = vperm.slane %v2610, %v2125
    %v2692 = vsel %vm2127, %v2691, %v2690
    %v2693 = vperm.slane %v2613, %v2129
    %v2694 = vsel %vm2131, %v2693, %v2692
    %v2695 = vperm.slane %v2616, %v2133
    %v2696 = vsel %vm2135, %v2695, %v2694
    %v2697 = vperm.slane %v2619, %v2137
    %v2698 = vsel %vm2139, %v2697, %v2696
    %v2699 = vperm.slane %v2622, %v2079
    %v2700 = vperm.slane %v2625, %v2081
    %v2701 = vsel %vm2083, %v2700, %v2699
    %v2702 = vperm.slane %v2628, %v2085
    %v2703 = vsel %vm2087, %v2702, %v2701
    %v2704 = vperm.slane %v2631, %v2089
    %v2705 = vsel %vm2091, %v2704, %v2703
    %v2706 = vperm.slane %v2634, %v2093
    %v2707 = vsel %vm2095, %v2706, %v2705
    %v2708 = vperm.slane %v2637, %v2097
    %v2709 = vsel %vm2099, %v2708, %v2707
    %v2710 = vperm.slane %v2640, %v2101
    %v2711 = vsel %vm2103, %v2710, %v2709
    %v2712 = vperm.slane %v2643, %v2105
    %v2713 = vsel %vm2107, %v2712, %v2711
    %v2714 = vperm.slane %v2646, %v2109
    %v2715 = vsel %vm2111, %v2714, %v2713
    %v2716 = vperm.slane %v2649, %v2113
    %v2717 = vsel %vm2115, %v2716, %v2715
    %v2718 = vperm.slane %v2652, %v2117
    %v2719 = vsel %vm2119, %v2718, %v2717
    %v2720 = vperm.slane %v2655, %v2121
    %v2721 = vsel %vm2123, %v2720, %v2719
    %v2722 = vperm.slane %v2658, %v2125
    %v2723 = vsel %vm2127, %v2722, %v2721
    %v2724 = vperm.slane %v2661, %v2129
    %v2725 = vsel %vm2131, %v2724, %v2723
    %v2726 = vperm.slane %v2664, %v2133
    %v2727 = vsel %vm2135, %v2726, %v2725
    %v2728 = vperm.slane %v2667, %v2137
    %v2729 = vsel %vm2139, %v2728, %v2727
    %v2730 = vsel %vm2172, %v2729, %v2698
    %2732 = vst [vmem:[#allocation2] sm:$0x3] %v2730
    // Predicated region
    $region18: #{tpu_custom_call.1} parent=1 // pred_check
      _
    $region19: #{tpu_custom_call.1} parent=1 // pred_check_branch
      %2734 = sbr.rel (0) target = $region21
    $region20: #{tpu_custom_call.1} parent=1 // pred_region
      %2736 = vsyncadd [#allocation3], 0
      %s2738 = sshll.u32 [#allocation2], 4
      %s2739 = int_to_ptr.vmem [resolvable:$true] %s2738
      %s2740 = sshll.u32 %s4, 4
      %s2741 = int_to_ptr.hbm [resolvable:$true] %s2740
      %2743 = dma.vmem_to_hbm [thread:$0]  %s2739, 32, %s2741, [#allocation3]
    $region21: #{tpu_custom_call.1} parent=1 // pred_fallthru
      _
    // Predicated region
    $region22: #{tpu_custom_call.1} parent=1 // pred_check
      _
    $region23: #{tpu_custom_call.1} parent=1 // pred_check_branch
      %2745 = sbr.rel (0) target = $region25
    $region24: #{tpu_custom_call.1} parent=1 // pred_region
      %2747 = dma.done [#allocation3], 32
    $region25: #{tpu_custom_call.1} parent=1 // pred_fallthru
      _
    %2748 = vsyncpa [#allocation3], 1

</llo_original>
